<compile_context>
chip_gen: v7x
topology: tpu7x:2x2x1
jax: 0.10.0
libtpu: 0.0.40
codegen_flags: <defaults>
</compile_context>

<pallas_src>
import jax
import jax.numpy as jnp
import numpy as np
from jax.experimental import pallas as pl
from jax.experimental.pallas import tpu as pltpu

_LANE = 128
_SUBLANE = 8


def _round_up(x, m):
    return ((x + m - 1) // m) * m


# ----------------------------------------------------------------------------
# Pallas kernel: fused shared-MLP (1x1 convs + folded BN + LeakyReLU) + maxpool
# ----------------------------------------------------------------------------
def _make_mlp_maxpool_kernel(n_layers, tile_m, ns_pad):
    def kernel(*refs):
        x_ref = refs[0]              # (tile_m * ns_pad, cin_pad)  bf16
        o_ref = refs[-1]             # (tile_m, cout_pad)          bf16/f32
        h = x_ref[...]
        for l in range(n_layers):
            w = refs[1 + 2 * l][...]        # (cin_l_pad, cout_l_pad) bf16, BN scale folded
            shift = refs[2 + 2 * l][...]    # (1, cout_l_pad)         f32
            h = jnp.dot(h, w, preferred_element_type=jnp.float32)    # MXU, f32 acc
            h = h + shift                                            # folded BatchNorm2d
            h = jnp.maximum(h, jnp.float32(0.1) * h)                 # LeakyReLU(0.1)
            if l != n_layers - 1:
                h = h.astype(jnp.bfloat16)                           # bf16 MXU feed
        cout = h.shape[-1]
        pooled = jnp.max(h.reshape(tile_m, ns_pad, cout), axis=1)    # maxpool over nsample
        o_ref[...] = pooled.astype(o_ref.dtype)
    return kernel


def _vmem_capacity_bytes():
    try:
        return int(pltpu.get_tpu_info().vmem_capacity_bytes)
    except Exception:
        return 64 * 1024 * 1024


def _choose_tile_m(M, ns_pad, n_layers, out_bytes, target_rows=16384):
    """Largest power-of-two tile_m whose (lane-padded) VMEM footprint fits a
    generation-aware budget; keeps >=2 grid steps only on 2-TC (64 MiB) parts."""
    cap = _vmem_capacity_bytes()
    vmem_limit = min(int(cap * 0.75), 112 * 1024 * 1024)
    budget = vmem_limit - (4 << 20)                 # headroom for weights/scratch
    two_core = cap <= (80 * 1024 * 1024)            # v7x-like: 64 MiB/TC, 2 TCs

    weights_bytes = n_layers * 2 * (_LANE * _LANE * 2 + _LANE * 4)

    def est(tm):                                    # all dims already 128-lane padded
        rows = tm * ns_pad
        return (2 * rows * _LANE * 2                # bf16 input block, double-buffered
                + 2 * tm * _LANE * out_bytes        # output block, double-buffered
                + 3 * rows * _LANE * 4              # f32 intermediates
                + weights_bytes)

    min_tile = 16 if out_bytes == 2 else 8          # bf16 output: keep (16,128) tiles
    max_tm = max(min_tile, pl.next_power_of_2(max(M, 1)))
    tm = min_tile
    for cand in (4096, 2048, 1024, 512, 256, 128, 64, 32, 16, 8):
        if cand < min_tile or cand > max_tm:
            continue
        if cand > min_tile and cand * ns_pad > target_rows:
            continue
        if est(cand) > budget:
            continue
        if two_core and cand > min_tile and M > min_tile and pl.cdiv(M, cand) < 2:
            continue                                # keep >=2 grid steps for 2-TC chips
        tm = cand
        break
    return tm, vmem_limit


def shared_mlp_maxpool(x, layers, out_dtype=jnp.bfloat16):
    """x: (M, ns_pad, cin_pad) bf16, ns_pad % 8 == 0, cin_pad % 128 == 0.
    layers: list of (W(Cin,Cout), scale(1,Cout), shift(1,Cout)) f32 (unpadded)."""
    M, ns_pad, cin_pad = x.shape
    n_layers = len(layers)
    cout = layers[-1][0].shape[1]
    cout_pad = _round_up(cout, _LANE)

    # Fold BN scale into W, pad every channel dim to 128 lanes, cast to bf16.
    prepped = []
    cprev = cin_pad
    for (w, scale, shift) in layers:
        ci, co = w.shape
        co_pad = _round_up(co, _LANE)
        wf = (w * scale).astype(jnp.float32)            # W' = W * scale (eval-mode fold)
        wf = jnp.pad(wf, ((0, cprev - ci), (0, co_pad - co)))
        sf = jnp.pad(shift, ((0, 0), (0, co_pad - co)))
        prepped.append((wf.astype(jnp.bfloat16), sf.astype(jnp.float32)))
        cprev = co_pad

    out_bytes = jnp.dtype(out_dtype).itemsize
    tile_m, vmem_limit = _choose_tile_m(M, ns_pad, n_layers, out_bytes)
    m_pad = _round_up(M, tile_m)

    x2d = x.reshape(M * ns_pad, cin_pad)
    if m_pad != M:
        x2d = jnp.pad(x2d, ((0, (m_pad - M) * ns_pad), (0, 0)))

    rows = tile_m * ns_pad
    in_specs = [pl.BlockSpec((rows, cin_pad), lambda i: (i, 0))]
    args = [x2d]
    for (wf, sf) in prepped:
        in_specs.append(pl.BlockSpec(wf.shape, lambda i: (0, 0)))
        in_specs.append(pl.BlockSpec(sf.shape, lambda i: (0, 0)))
        args.extend([wf, sf])

    out = pl.pallas_call(
        _make_mlp_maxpool_kernel(n_layers, tile_m, ns_pad),
        out_shape=jax.ShapeDtypeStruct((m_pad, cout_pad), out_dtype),
        grid=(m_pad // tile_m,),
        in_specs=in_specs,
        out_specs=pl.BlockSpec((tile_m, cout_pad), lambda i: (i, 0)),
        compiler_params=pltpu.CompilerParams(
            dimension_semantics=("parallel",),
            vmem_limit_bytes=vmem_limit),
    )(*args)
    return out[:M, :cout]


# ----------------------------------------------------------------------------
# Plain-JAX glue: FPS, ball query, grouping (pointops equivalents)
# ----------------------------------------------------------------------------
def farthest_point_sample(xyz, npoint):
    """xyz: (B, N, 3) -> (B, npoint) int32 indices (starts from point 0)."""
    B, N, _ = xyz.shape
    bidx = jnp.arange(B)[:, None]

    def body(i, state):
        dist, idxs, farthest = state
        idxs = idxs.at[:, i].set(farthest)
        centroid = xyz[bidx, farthest[:, None]]            # (B, 1, 3)
        d = jnp.sum((xyz - centroid) ** 2, axis=-1)        # (B, N)
        dist = jnp.minimum(dist, d)
        farthest = jnp.argmax(dist, axis=-1).astype(jnp.int32)
        return dist, idxs, farthest

    init = (jnp.full((B, N), 1e10, jnp.float32),
            jnp.zeros((B, npoint), jnp.int32),
            jnp.zeros((B,), jnp.int32))
    _, idxs, _ = jax.lax.fori_loop(0, npoint, body, init)
    return idxs


def ball_query(radius, nsample, xyz, new_xyz):
    """xyz: (B,N,3), new_xyz: (B,S,3) -> (B,S,nsample) int32 indices."""
    # TODO(synk): for large N replace the O(N log N) sort with a cumsum/scatter
    # selection of the first nsample in-ball indices; the sort (and the serial
    # FPS loop above) can dominate end-to-end latency at realistic point counts.
    B, N, _ = xyz.shape
    S = new_xyz.shape[1]
    sqrdists = jnp.sum((new_xyz[:, :, None, :] - xyz[:, None, :, :]) ** 2, axis=-1)
    arange = jnp.broadcast_to(jnp.arange(N, dtype=jnp.int32), (B, S, N))
    gidx = jnp.where(sqrdists > radius * radius, N, arange)
    gidx = jnp.sort(gidx, axis=-1)[:, :, :nsample]         # first nsample in-ball indices
    first = jnp.broadcast_to(gidx[:, :, :1], gidx.shape)
    gidx = jnp.where(gidx == N, first, gidx)               # pad with first in-ball index
    # Empty-ball fallback: clamp to the last point (pointops pads differently;
    # this only triggers when no point at all lies within the radius).
    gidx = jnp.minimum(gidx, N - 1)
    return gidx.astype(jnp.int32)


def sa_module_forward(xyz, features, npoint, radius, nsample, layers, out_dtype):
    """One PointnetSAModule (use_xyz=True).  xyz:(B,N,3) f32, features:(B,C,N)."""
    B, N, _ = xyz.shape
    bidx2 = jnp.arange(B)[:, None]
    bidx3 = jnp.arange(B)[:, None, None]

    fps_idx = farthest_point_sample(xyz, npoint)                  # (B, npoint)
    new_xyz = xyz[bidx2, fps_idx]                                 # (B, npoint, 3)
    gidx = ball_query(radius, nsample, xyz, new_xyz)              # (B, npoint, nsample)

    # Pad nsample to a multiple of 8 by duplicating an in-ball neighbour
    # (duplicates do not change the max-pool result).
    ns_pad = _round_up(nsample, _SUBLANE)
    if ns_pad != nsample:
        gidx = jnp.concatenate(
            [gidx, jnp.broadcast_to(gidx[:, :, :1], (B, npoint, ns_pad - nsample))],
            axis=-1)

    # Build the grouped neighbourhood tensor directly in bf16 with channels
    # padded to 128 lanes in the same concat (single materialization).
    grouped_xyz = (xyz[bidx3, gidx] - new_xyz[:, :, None, :]).astype(jnp.bfloat16)
    feats_nl = jnp.transpose(features, (0, 2, 1)).astype(jnp.bfloat16)   # (B, N, C)
    grouped_feats = feats_nl[bidx3, gidx]                                # (B,np,ns,C)
    cin = 3 + feats_nl.shape[-1]
    cin_pad = _round_up(cin, _LANE)
    zpad = jnp.zeros((B, npoint, ns_pad, cin_pad - cin), jnp.bfloat16)
    grouped = jnp.concatenate([grouped_xyz, grouped_feats, zpad], axis=-1)

    M = B * npoint
    x = grouped.reshape(M, ns_pad, cin_pad)
    out = shared_mlp_maxpool(x, layers, out_dtype)                # (M, Cout)
    new_features = jnp.transpose(out.reshape(B, npoint, -1), (0, 2, 1))  # (B,Cout,npoint)
    return new_xyz, new_features


def pointnet2_forward(pointcloud, params, npoints, radii, nsample):
    """pointcloud: (B, N, D) with D >= 3.  Returns (B, C_last, npoint_last) f32."""
    xyz = pointcloud[..., 0:3]
    if pointcloud.shape[-1] > 3:
        features = jnp.transpose(pointcloud[..., 3:], (0, 2, 1))
    else:
        features = jnp.transpose(xyz, (0, 2, 1))
    l_xyz, l_feat = xyz, features
    n_mod = len(npoints)
    for i in range(n_mod):
        out_dtype = jnp.float32 if i == n_mod - 1 else jnp.bfloat16
        l_xyz, l_feat = sa_module_forward(
            l_xyz, l_feat, npoints[i], radii[i], nsample, params[i], out_dtype)
    return l_feat


# ----------------------------------------------------------------------------
# Deterministic parameter init (Conv2d 1x1 weights; BatchNorm folded to affine)
# ----------------------------------------------------------------------------
def init_params(key, mlp_specs):
    # TODO(synk): BatchNorm2d is folded as eval-mode affine (running_mean=0,
    # running_var=1); training-mode batch statistics are not reproduced.
    eps = 1e-5
    params = []
    for spec in mlp_specs:
        layers = []
        for i in range(1, len(spec)):
            cin, cout = spec[i - 1], spec[i]
            key, kw, kg, kb = jax.random.split(key, 4)
            bound = 1.0 / np.sqrt(cin)
            w = jax.random.uniform(kw, (cin, cout), jnp.float32, -bound, bound)
            gamma = 1.0 + 0.1 * jax.random.normal(kg, (1, cout), jnp.float32)
            beta = 0.1 * jax.random.normal(kb, (1, cout), jnp.float32)
            running_mean = jnp.zeros((1, cout), jnp.float32)
            running_var = jnp.ones((1, cout), jnp.float32)
            scale = gamma / jnp.sqrt(running_var + eps)
            shift = beta - running_mean * scale
            layers.append((w, scale, shift))
        params.append(layers)
    return params


if __name__ == "__main__":
    key = jax.random.PRNGKey(0)
    B, N = 2, 32
    nsample = 8
    npoints = [16, 8]
    radii = [0.4, 0.8]
    mlps = [[3, 16, 32], [32, 32, 64]]                    # config.model.mlps
    mlp_specs = [[m[0] + 3] + m[1:] for m in mlps]        # use_xyz=True adds 3

    kp, kx, kf = jax.random.split(key, 3)
    params = init_params(kp, mlp_specs)

    xyz = jax.random.uniform(kx, (B, N, 3), jnp.float32)
    feats = jax.random.normal(kf, (B, N, 3), jnp.float32)
    pointcloud = jnp.concatenate([xyz, feats], axis=-1)   # (B, N, 6)

    fwd = jax.jit(lambda pc: pointnet2_forward(pc, params, npoints, radii, nsample))
    out = fwd(pointcloud)
    out = jax.block_until_ready(out)

    assert out.shape == (B, mlps[-1][-1], npoints[-1]), out.shape
    assert out.dtype == jnp.float32
    assert bool(jnp.all(jnp.isfinite(out)))
    print("KERNEL_OK")
</pallas_src>

<mosaic_0001>
module attributes {stable_mosaic.version = 11 : i64} {
  func.func @kernel(%arg0: i32, %arg1: memref<128x128xbf16, #tpu.memory_space<vmem>>, %arg2: memref<128x128xbf16, #tpu.memory_space<vmem>>, %arg3: memref<1x128xf32, #tpu.memory_space<vmem>>, %arg4: memref<128x128xbf16, #tpu.memory_space<vmem>>, %arg5: memref<1x128xf32, #tpu.memory_space<vmem>>, %arg6: memref<16x128xbf16, #tpu.memory_space<vmem>>) attributes {dimension_semantics = [#tpu.dimension_semantics<parallel>], iteration_bounds = array<i64: 2>, scalar_prefetch = 0 : i64, scratch_operands = 0 : i64, tpu.core_type = #tpu.core_type<tc>, window_params = [{transform_indices = @transform_0, window_bounds = array<i64: 128, 128>}, {pipeline_mode = #tpu.pipeline_mode<synchronous>, transform_indices = @transform_1, window_bounds = array<i64: 128, 128>}, {pipeline_mode = #tpu.pipeline_mode<synchronous>, transform_indices = @transform_2, window_bounds = array<i64: 1, 128>}, {pipeline_mode = #tpu.pipeline_mode<synchronous>, transform_indices = @transform_3, window_bounds = array<i64: 128, 128>}, {pipeline_mode = #tpu.pipeline_mode<synchronous>, transform_indices = @transform_4, window_bounds = array<i64: 1, 128>}, {transform_indices = @transform_5, window_bounds = array<i64: 16, 128>}]} {
    %c0 = arith.constant 0 : index
    %c0_0 = arith.constant 0 : index
    %0 = vector.load %arg1[%c0, %c0_0] : memref<128x128xbf16, #tpu.memory_space<vmem>>, vector<128x128xbf16>
    %c0_1 = arith.constant 0 : index
    %c0_2 = arith.constant 0 : index
    %1 = vector.load %arg2[%c0_1, %c0_2] : memref<128x128xbf16, #tpu.memory_space<vmem>>, vector<128x128xbf16>
    %c0_3 = arith.constant 0 : index
    %c0_4 = arith.constant 0 : index
    %2 = vector.load %arg3[%c0_3, %c0_4] : memref<1x128xf32, #tpu.memory_space<vmem>>, vector<1x128xf32>
    %cst = arith.constant dense<0.000000e+00> : vector<128x128xf32>
    %3 = tpu.matmul %0, %1, %cst {dimension_numbers = #tpu.dot_dimension_numbers<[1], [0], [0], [1], [0, 0, 1, 1], [], []>} : vector<128x128xbf16>, vector<128x128xbf16>, vector<128x128xf32> -> vector<128x128xf32>
    %4 = vector.broadcast %2 : vector<1x128xf32> to vector<128x128xf32>
    %5 = arith.addf %3, %4 : vector<128x128xf32>
    %cst_5 = arith.constant 1.000000e-01 : f32
    %6 = vector.broadcast %cst_5 : f32 to vector<128x128xf32>
    %7 = arith.mulf %6, %5 : vector<128x128xf32>
    %8 = arith.maximumf %5, %7 : vector<128x128xf32>
    %9 = arith.truncf %8 : vector<128x128xf32> to vector<128x128xbf16>
    %c0_6 = arith.constant 0 : index
    %c0_7 = arith.constant 0 : index
    %10 = vector.load %arg4[%c0_6, %c0_7] : memref<128x128xbf16, #tpu.memory_space<vmem>>, vector<128x128xbf16>
    %c0_8 = arith.constant 0 : index
    %c0_9 = arith.constant 0 : index
    %11 = vector.load %arg5[%c0_8, %c0_9] : memref<1x128xf32, #tpu.memory_space<vmem>>, vector<1x128xf32>
    %cst_10 = arith.constant dense<0.000000e+00> : vector<128x128xf32>
    %12 = tpu.matmul %9, %10, %cst_10 {dimension_numbers = #tpu.dot_dimension_numbers<[1], [0], [0], [1], [0, 0, 1, 1], [], []>} : vector<128x128xbf16>, vector<128x128xbf16>, vector<128x128xf32> -> vector<128x128xf32>
    %13 = vector.broadcast %11 : vector<1x128xf32> to vector<128x128xf32>
    %14 = arith.addf %12, %13 : vector<128x128xf32>
    %cst_11 = arith.constant 1.000000e-01 : f32
    %15 = vector.broadcast %cst_11 : f32 to vector<128x128xf32>
    %16 = arith.mulf %15, %14 : vector<128x128xf32>
    %17 = arith.maximumf %14, %16 : vector<128x128xf32>
    %18 = vector.shape_cast %17 : vector<128x128xf32> to vector<16x8x128xf32>
    %cst_12 = arith.constant dense<0xFF800000> : vector<16x128xf32>
    %19 = vector.multi_reduction <maximumf>, %18, %cst_12 [1] : vector<16x8x128xf32> to vector<16x128xf32>
    %20 = arith.truncf %19 : vector<16x128xf32> to vector<16x128xbf16>
    %c0_13 = arith.constant 0 : index
    %c0_14 = arith.constant 0 : index
    %21 = vector.load %arg6[%c0_13, %c0_14] : memref<16x128xbf16, #tpu.memory_space<vmem>>, vector<16x128xbf16>
    tpu.vector_store %arg6[%c0_13, %c0_14], %20 {strides = array<i32>} : memref<16x128xbf16, #tpu.memory_space<vmem>>, vector<16x128xbf16>,
    return
  }
  func.func @transform_0(%arg0: i32) -> (i32, i32) {
    %c0_i32 = arith.constant 0 : i32
    %c0_i32_0 = arith.constant 0 : i32
    return %arg0, %c0_i32 : i32, i32
  }
  func.func @transform_1(%arg0: i32) -> (i32, i32) {
    %c0_i32 = arith.constant 0 : i32
    %c0_i32_0 = arith.constant 0 : i32
    %c0_i32_1 = arith.constant 0 : i32
    return %c0_i32, %c0_i32_0 : i32, i32
  }
  func.func @transform_2(%arg0: i32) -> (i32, i32) {
    %c0_i32 = arith.constant 0 : i32
    %c0_i32_0 = arith.constant 0 : i32
    %c0_i32_1 = arith.constant 0 : i32
    return %c0_i32, %c0_i32_0 : i32, i32
  }
  func.func @transform_3(%arg0: i32) -> (i32, i32) {
    %c0_i32 = arith.constant 0 : i32
    %c0_i32_0 = arith.constant 0 : i32
    %c0_i32_1 = arith.constant 0 : i32
    return %c0_i32, %c0_i32_0 : i32, i32
  }
  func.func @transform_4(%arg0: i32) -> (i32, i32) {
    %c0_i32 = arith.constant 0 : i32
    %c0_i32_0 = arith.constant 0 : i32
    %c0_i32_1 = arith.constant 0 : i32
    return %c0_i32, %c0_i32_0 : i32, i32
  }
  func.func @transform_5(%arg0: i32) -> (i32, i32) {
    %c0_i32 = arith.constant 0 : i32
    %c0_i32_0 = arith.constant 0 : i32
    return %arg0, %c0_i32 : i32, i32
  }
}

module attributes {stable_mosaic.version = 11 : i64} {
  func.func @kernel(%arg0: i32, %arg1: memref<64x128xbf16, #tpu.memory_space<vmem>>, %arg2: memref<128x128xbf16, #tpu.memory_space<vmem>>, %arg3: memref<1x128xf32, #tpu.memory_space<vmem>>, %arg4: memref<128x128xbf16, #tpu.memory_space<vmem>>, %arg5: memref<1x128xf32, #tpu.memory_space<vmem>>, %arg6: memref<8x128xf32, #tpu.memory_space<vmem>>) attributes {dimension_semantics = [#tpu.dimension_semantics<parallel>], iteration_bounds = array<i64: 2>, scalar_prefetch = 0 : i64, scratch_operands = 0 : i64, tpu.core_type = #tpu.core_type<tc>, window_params = [{transform_indices = @transform_0, window_bounds = array<i64: 64, 128>}, {pipeline_mode = #tpu.pipeline_mode<synchronous>, transform_indices = @transform_1, window_bounds = array<i64: 128, 128>}, {pipeline_mode = #tpu.pipeline_mode<synchronous>, transform_indices = @transform_2, window_bounds = array<i64: 1, 128>}, {pipeline_mode = #tpu.pipeline_mode<synchronous>, transform_indices = @transform_3, window_bounds = array<i64: 128, 128>}, {pipeline_mode = #tpu.pipeline_mode<synchronous>, transform_indices = @transform_4, window_bounds = array<i64: 1, 128>}, {transform_indices = @transform_5, window_bounds = array<i64: 8, 128>}]} {
    %c0 = arith.constant 0 : index
    %c0_0 = arith.constant 0 : index
    %0 = vector.load %arg1[%c0, %c0_0] : memref<64x128xbf16, #tpu.memory_space<vmem>>, vector<64x128xbf16>
    %c0_1 = arith.constant 0 : index
    %c0_2 = arith.constant 0 : index
    %1 = vector.load %arg2[%c0_1, %c0_2] : memref<128x128xbf16, #tpu.memory_space<vmem>>, vector<128x128xbf16>
    %c0_3 = arith.constant 0 : index
    %c0_4 = arith.constant 0 : index
    %2 = vector.load %arg3[%c0_3, %c0_4] : memref<1x128xf32, #tpu.memory_space<vmem>>, vector<1x128xf32>
    %cst = arith.constant dense<0.000000e+00> : vector<64x128xf32>
    %3 = tpu.matmul %0, %1, %cst {dimension_numbers = #tpu.dot_dimension_numbers<[1], [0], [0], [1], [0, 0, 1, 1], [], []>} : vector<64x128xbf16>, vector<128x128xbf16>, vector<64x128xf32> -> vector<64x128xf32>
    %4 = vector.broadcast %2 : vector<1x128xf32> to vector<64x128xf32>
    %5 = arith.addf %3, %4 : vector<64x128xf32>
    %cst_5 = arith.constant 1.000000e-01 : f32
    %6 = vector.broadcast %cst_5 : f32 to vector<64x128xf32>
    %7 = arith.mulf %6, %5 : vector<64x128xf32>
    %8 = arith.maximumf %5, %7 : vector<64x128xf32>
    %9 = arith.truncf %8 : vector<64x128xf32> to vector<64x128xbf16>
    %c0_6 = arith.constant 0 : index
    %c0_7 = arith.constant 0 : index
    %10 = vector.load %arg4[%c0_6, %c0_7] : memref<128x128xbf16, #tpu.memory_space<vmem>>, vector<128x128xbf16>
    %c0_8 = arith.constant 0 : index
    %c0_9 = arith.constant 0 : index
    %11 = vector.load %arg5[%c0_8, %c0_9] : memref<1x128xf32, #tpu.memory_space<vmem>>, vector<1x128xf32>
    %cst_10 = arith.constant dense<0.000000e+00> : vector<64x128xf32>
    %12 = tpu.matmul %9, %10, %cst_10 {dimension_numbers = #tpu.dot_dimension_numbers<[1], [0], [0], [1], [0, 0, 1, 1], [], []>} : vector<64x128xbf16>, vector<128x128xbf16>, vector<64x128xf32> -> vector<64x128xf32>
    %13 = vector.broadcast %11 : vector<1x128xf32> to vector<64x128xf32>
    %14 = arith.addf %12, %13 : vector<64x128xf32>
    %cst_11 = arith.constant 1.000000e-01 : f32
    %15 = vector.broadcast %cst_11 : f32 to vector<64x128xf32>
    %16 = arith.mulf %15, %14 : vector<64x128xf32>
    %17 = arith.maximumf %14, %16 : vector<64x128xf32>
    %18 = vector.shape_cast %17 : vector<64x128xf32> to vector<8x8x128xf32>
    %cst_12 = arith.constant dense<0xFF800000> : vector<8x128xf32>
    %19 = vector.multi_reduction <maximumf>, %18, %cst_12 [1] : vector<8x8x128xf32> to vector<8x128xf32>
    %c0_13 = arith.constant 0 : index
    %c0_14 = arith.constant 0 : index
    %20 = vector.load %arg6[%c0_13, %c0_14] : memref<8x128xf32, #tpu.memory_space<vmem>>, vector<8x128xf32>
    tpu.vector_store %arg6[%c0_13, %c0_14], %19 {strides = array<i32>} : memref<8x128xf32, #tpu.memory_space<vmem>>, vector<8x128xf32>,
    return
  }
  func.func @transform_0(%arg0: i32) -> (i32, i32) {
    %c0_i32 = arith.constant 0 : i32
    %c0_i32_0 = arith.constant 0 : i32
    return %arg0, %c0_i32 : i32, i32
  }
  func.func @transform_1(%arg0: i32) -> (i32, i32) {
    %c0_i32 = arith.constant 0 : i32
    %c0_i32_0 = arith.constant 0 : i32
    %c0_i32_1 = arith.constant 0 : i32
    return %c0_i32, %c0_i32_0 : i32, i32
  }
  func.func @transform_2(%arg0: i32) -> (i32, i32) {
    %c0_i32 = arith.constant 0 : i32
    %c0_i32_0 = arith.constant 0 : i32
    %c0_i32_1 = arith.constant 0 : i32
    return %c0_i32, %c0_i32_0 : i32, i32
  }
  func.func @transform_3(%arg0: i32) -> (i32, i32) {
    %c0_i32 = arith.constant 0 : i32
    %c0_i32_0 = arith.constant 0 : i32
    %c0_i32_1 = arith.constant 0 : i32
    return %c0_i32, %c0_i32_0 : i32, i32
  }
  func.func @transform_4(%arg0: i32) -> (i32, i32) {
    %c0_i32 = arith.constant 0 : i32
    %c0_i32_0 = arith.constant 0 : i32
    %c0_i32_1 = arith.constant 0 : i32
    return %c0_i32, %c0_i32_0 : i32, i32
  }
  func.func @transform_5(%arg0: i32) -> (i32, i32) {
    %c0_i32 = arith.constant 0 : i32
    %c0_i32_0 = arith.constant 0 : i32
    return %arg0, %c0_i32 : i32, i32
  }
}

</mosaic_0001>

<llo_original>
// kernel: custom-call.16
$region0: #{custom-call.16}
  %s0 = inlined_call_operand.vmem [shape: f32[2,32], index: 0, kind: output, shape index: {}]

// kernel: custom-call.17
$region0: #{custom-call.17}
  %s0 = inlined_call_operand.vmem [shape: f32[2,16], index: 0, kind: output, shape index: {}]

// kernel: _lambda_.2
$region0: #{_lambda_.2}
  #allocation0 [shape = 'u32[]', space=smem, size = 0x4, offset = 0x4, fixed_abs, tag = 'smem constant byte address 0x4 - core index']
  #allocation1 [shape = 'u32[144,128]{1,0:T(1,128)}', space=vmem, size = 0x12000, scoped, tag = 'internal scratch']
  %s0 = inlined_call_operand.vmem [shape: bf16[256,128], index: 0, kind: input, shape index: {}]
  %s1 = inlined_call_operand.vmem [shape: bf16[128,128], index: 1, kind: input, shape index: {}]
  %s2 = inlined_call_operand.vmem [shape: f32[1,128], index: 2, kind: input, shape index: {}]
  %s3 = inlined_call_operand.vmem [shape: bf16[128,128], index: 3, kind: input, shape index: {}]
  %s4 = inlined_call_operand.vmem [shape: f32[1,128], index: 4, kind: input, shape index: {}]
  %s5 = inlined_call_operand.vmem [shape: bf16[32,128], index: 5, kind: output, shape index: {}]
  %s6 = sld [smem:[#allocation0]]
  $region53: #{_lambda_.2} parent=0
    _
  %s8 = ssub.s32 1, %s6
  %s9 = scalar_select 0, %s8, %s6
  loop: start=0, step=1, limit=4
  $region2: #{_lambda_.2} parent=0 // loop_pre_header
    _
  $region3: #{_lambda_.2} parent=0 // loop_header
    %s11 = sphi 0, %s15
    %p12 = scmp.ge.s32.totalorder %s11, 4
    %s21 = sphi 0, %s23
    %s24 = sphi 0, %s21
    %s25 = sphi 0, %s24
    %s41 = sphi 0, %s25
    %s45 = sphi 0, %s45
    %s47 = sphi 0, %s45
    %s48 = sphi 0, %s47
    %s62 = sphi 0, %s48
    %s66 = sphi 0, %s66
    %s68 = sphi 0, %s66
    %s69 = sphi 0, %s68
    %s83 = sphi 0, %s69
    %s87 = sphi 0, %s87
    %s89 = sphi 0, %s87
    %s90 = sphi 0, %s89
    %s104 = sphi 0, %s90
    %s108 = sphi 0, %s108
    %s110 = sphi 0, %s108
    %s111 = sphi 0, %s110
    %s125 = sphi 0, %s111
    %s131 = sphi 0, %s133
    %s134 = sphi 0, %s131
    %s135 = sphi 0, %s134
    %s151 = sphi 0, %s135
  $region4: #{_lambda_.2} parent=0 // loop_header_branch
    %14 = sbr.rel (%p12) target = $region8
  $region5: #{_lambda_.2} parent=0 // loop_body
    %s16 = ssub.s32 %s11, 1
    %s17 = ssub.s32 %s11, 2
    %s18 = sadd.s32 %s11, 1
    %s19 = ssub.s32 %s11, %s18
    %p20 = scmp.eq.s32.totalorder %s19, 0
    %s22 = sadd.s32 %s21, 1
    %s23 = scalar_select %p20, %s21, %s22
    %p26 = pneg %p20
    %p27 = scmp.eq.s32.totalorder %s11, 1
    %p28 = por %p26, %p27
    %p29 = scmp.ne.s32.totalorder %s21, %s24
    %p30 = scmp.eq.s32.totalorder %s11, 0
    %p31 = por %p29, %p30
    %p32 = scmp.ne.s32.totalorder %s21, %s24
    %p33 = scmp.eq.s32.totalorder %s16, 1
    %p34 = por %p32, %p33
    %p35 = scmp.ne.s32.totalorder %s24, %s25
    %p36 = scmp.eq.s32.totalorder %s16, 0
    %p37 = por %p35, %p36
    %p38 = scmp.ne.s32.totalorder %s24, %s25
    %p39 = scmp.eq.s32.totalorder %s17, 1
    %p40 = por %p38, %p39
    %p42 = scmp.ne.s32.totalorder %s25, %s41
    %p43 = scmp.eq.s32.totalorder %s17, 0
    %p44 = por %p42, %p43
    %s46 = sadd.s32 %s45, 1
    %p49 = scmp.eq.s32.totalorder %s11, 1
    %p50 = scmp.ne.s32.totalorder %s45, %s47
    %p51 = scmp.eq.s32.totalorder %s11, 0
    %p52 = por %p50, %p51
    %p53 = scmp.ne.s32.totalorder %s45, %s47
    %p54 = scmp.eq.s32.totalorder %s16, 1
    %p55 = por %p53, %p54
    %p56 = scmp.ne.s32.totalorder %s47, %s48
    %p57 = scmp.eq.s32.totalorder %s16, 0
    %p58 = por %p56, %p57
    %p59 = scmp.ne.s32.totalorder %s47, %s48
    %p60 = scmp.eq.s32.totalorder %s17, 1
    %p61 = por %p59, %p60
    %p63 = scmp.ne.s32.totalorder %s48, %s62
    %p64 = scmp.eq.s32.totalorder %s17, 0
    %p65 = por %p63, %p64
    %s67 = sadd.s32 %s66, 1
    %p70 = scmp.eq.s32.totalorder %s11, 1
    %p71 = scmp.ne.s32.totalorder %s66, %s68
    %p72 = scmp.eq.s32.totalorder %s11, 0
    %p73 = por %p71, %p72
    %p74 = scmp.ne.s32.totalorder %s66, %s68
    %p75 = scmp.eq.s32.totalorder %s16, 1
    %p76 = por %p74, %p75
    %p77 = scmp.ne.s32.totalorder %s68, %s69
    %p78 = scmp.eq.s32.totalorder %s16, 0
    %p79 = por %p77, %p78
    %p80 = scmp.ne.s32.totalorder %s68, %s69
    %p81 = scmp.eq.s32.totalorder %s17, 1
    %p82 = por %p80, %p81
    %p84 = scmp.ne.s32.totalorder %s69, %s83
    %p85 = scmp.eq.s32.totalorder %s17, 0
    %p86 = por %p84, %p85
    %s88 = sadd.s32 %s87, 1
    %p91 = scmp.eq.s32.totalorder %s11, 1
    %p92 = scmp.ne.s32.totalorder %s87, %s89
    %p93 = scmp.eq.s32.totalorder %s11, 0
    %p94 = por %p92, %p93
    %p95 = scmp.ne.s32.totalorder %s87, %s89
    %p96 = scmp.eq.s32.totalorder %s16, 1
    %p97 = por %p95, %p96
    %p98 = scmp.ne.s32.totalorder %s89, %s90
    %p99 = scmp.eq.s32.totalorder %s16, 0
    %p100 = por %p98, %p99
    %p101 = scmp.ne.s32.totalorder %s89, %s90
    %p102 = scmp.eq.s32.totalorder %s17, 1
    %p103 = por %p101, %p102
    %p105 = scmp.ne.s32.totalorder %s90, %s104
    %p106 = scmp.eq.s32.totalorder %s17, 0
    %p107 = por %p105, %p106
    %s109 = sadd.s32 %s108, 1
    %p112 = scmp.eq.s32.totalorder %s11, 1
    %p113 = scmp.ne.s32.totalorder %s108, %s110
    %p114 = scmp.eq.s32.totalorder %s11, 0
    %p115 = por %p113, %p114
    %p116 = scmp.ne.s32.totalorder %s108, %s110
    %p117 = scmp.eq.s32.totalorder %s16, 1
    %p118 = por %p116, %p117
    %p119 = scmp.ne.s32.totalorder %s110, %s111
    %p120 = scmp.eq.s32.totalorder %s16, 0
    %p121 = por %p119, %p120
    %p122 = scmp.ne.s32.totalorder %s110, %s111
    %p123 = scmp.eq.s32.totalorder %s17, 1
    %p124 = por %p122, %p123
    %p126 = scmp.ne.s32.totalorder %s111, %s125
    %p127 = scmp.eq.s32.totalorder %s17, 0
    %p128 = por %p126, %p127
    %s129 = ssub.s32 %s11, %s18
    %p130 = scmp.eq.s32.totalorder %s129, 0
    %s132 = sadd.s32 %s131, 1
    %s133 = scalar_select %p130, %s131, %s132
    %p136 = pneg %p130
    %p137 = scmp.eq.s32.totalorder %s11, 1
    %p138 = por %p136, %p137
    %p139 = scmp.ne.s32.totalorder %s131, %s134
    %p140 = scmp.eq.s32.totalorder %s11, 0
    %p141 = por %p139, %p140
    %p142 = scmp.ne.s32.totalorder %s131, %s134
    %p143 = scmp.eq.s32.totalorder %s16, 1
    %p144 = por %p142, %p143
    %p145 = scmp.ne.s32.totalorder %s134, %s135
    %p146 = scmp.eq.s32.totalorder %s16, 0
    %p147 = por %p145, %p146
    %p148 = scmp.ne.s32.totalorder %s134, %s135
    %p149 = scmp.eq.s32.totalorder %s17, 1
    %p150 = por %p148, %p149
    %p152 = scmp.ne.s32.totalorder %s135, %s151
    %p153 = scmp.eq.s32.totalorder %s17, 0
    %p154 = por %p152, %p153
    %p155 = scmp.le.s32.totalorder 1, %s11
    %p156 = scmp.lt.s32.totalorder %s11, 3
    %p157 = pnand %p155, %p156
    %p158 = pneg %p157
    // Predicated region
    $region9: #{_lambda_.2} parent=5 // pred_check
      _
    $region10: #{_lambda_.2} parent=5 // pred_check_branch
      %160 = sbr.rel (%p157) target = $region12
    $region11: #{_lambda_.2} parent=5 // pred_region
      %s161 = ssub.s32 %s11, 1
      // Predicated region
      $region13: #{_lambda_.2} parent=11 // pred_check
        %p162 = pneg %p58
      $region14: #{_lambda_.2} parent=11 // pred_check_branch
        %164 = sbr.rel (%p162) target = $region16
      $region15: #{_lambda_.2} parent=11 // pred_region
        _
      $region16: #{_lambda_.2} parent=11 // pred_fallthru
        _
      // Predicated region
      $region17: #{_lambda_.2} parent=11 // pred_check
        %p165 = pneg %p79
      $region18: #{_lambda_.2} parent=11 // pred_check_branch
        %167 = sbr.rel (%p165) target = $region20
      $region19: #{_lambda_.2} parent=11 // pred_region
        _
      $region20: #{_lambda_.2} parent=11 // pred_fallthru
        _
      // Predicated region
      $region21: #{_lambda_.2} parent=11 // pred_check
        %p168 = pneg %p100
      $region22: #{_lambda_.2} parent=11 // pred_check_branch
        %170 = sbr.rel (%p168) target = $region24
      $region23: #{_lambda_.2} parent=11 // pred_region
        _
      $region24: #{_lambda_.2} parent=11 // pred_fallthru
        _
      // Predicated region
      $region25: #{_lambda_.2} parent=11 // pred_check
        %p171 = pneg %p121
      $region26: #{_lambda_.2} parent=11 // pred_check_branch
        %173 = sbr.rel (%p171) target = $region28
      $region27: #{_lambda_.2} parent=11 // pred_region
        _
      $region28: #{_lambda_.2} parent=11 // pred_fallthru
        _
    $region12: #{_lambda_.2} parent=5 // pred_fallthru
      _
    %p174 = scmp.lt.s32.totalorder %s11, 2
    // Predicated region
    $region29: #{_lambda_.2} parent=5 // pred_check
      %p175 = pneg %p174
    $region30: #{_lambda_.2} parent=5 // pred_check_branch
      %177 = sbr.rel (%p175) target = $region32
    $region31: #{_lambda_.2} parent=5 // pred_region
      // Predicated region
      $region33: #{_lambda_.2} parent=31 // pred_check
        %p178 = pneg %p31
      $region34: #{_lambda_.2} parent=31 // pred_check_branch
        %180 = sbr.rel (%p178) target = $region36
      $region35: #{_lambda_.2} parent=31 // pred_region
        %s181 = smul.u32 16, %s11
        %p182 = scmp.lt.s32.totalorder %s181, 31
        %s183 = scalar_select %p182, %s181, 31
        %s184 = smul.addr %s183, 4
        %s185 = scalar_lea.vmem %s0, %s184
        %s186 = smul.u32 16, %s11
      $region36: #{_lambda_.2} parent=31 // pred_fallthru
        _
    $region32: #{_lambda_.2} parent=5 // pred_fallthru
      _
    %p187 = scmp.le.s32.totalorder 1, %s11
    %p188 = scmp.lt.s32.totalorder %s11, 3
    %p189 = pnand %p187, %p188
    %p190 = pneg %p189
    // Predicated region
    $region37: #{_lambda_.2} parent=5 // pred_check
      _
    $region38: #{_lambda_.2} parent=5 // pred_check_branch
      %192 = sbr.rel (%p189) target = $region40
    $region39: #{_lambda_.2} parent=5 // pred_region
      %s193 = ssub.s32 %s11, 1
      %s194 = smul.u32 16, %s16
      %p195 = scmp.lt.s32.totalorder %s194, 31
      %s196 = scalar_select %p195, %s194, 31
      %s197 = smul.addr %s196, 4
      %s198 = scalar_lea.vmem %s0, %s197
      %p199 = pneg %p37
      %p200 = pneg %p34
      %p201 = pneg %p58
      %p202 = pneg %p55
      %p203 = pneg %p79
      %p204 = pneg %p76
      %p205 = pneg %p100
      %p206 = pneg %p97
      %p207 = pneg %p121
      %p208 = pneg %p118
      %p209 = pneg %p147
      %p210 = pneg %p144
      %s211 = smul.u32 2, %s16
      %p212 = scmp.lt.s32.totalorder %s211, 3
      %s213 = scalar_select %p212, %s211, 3
      %s214 = smul.addr %s213, 4
      %s215 = scalar_lea.vmem %s5, %s214
      %s216 = smul.u32 16, %s16
      %p217 = scmp.lt.s32.totalorder %s216, 31
      %s218 = scalar_select %p217, %s216, 31
      %s219 = smul.addr %s218, 4
      %s220 = scalar_lea.vmem %s0, %s219
      %s221 = smul.u32 16, %s16
      %s222 = smul.u32 2, %s16
      %p223 = scmp.lt.s32.totalorder %s222, 3
      %s224 = scalar_select %p223, %s222, 3
      %s225 = smul.addr %s224, 4
      %s226 = scalar_lea.vmem %s5, %s225
      %s227 = smul.u32 2, %s16
      %v229 = vld [vmem:[%s220] sm:$0xf]
      %v230 = vld [vmem:[%s220 + $0x4] sm:$0xf]
      %v231 = vld [vmem:[%s220 + $0x8] sm:$0xf]
      %v232 = vld [vmem:[%s220 + $0xc] sm:$0xf]
      %v233 = vld [vmem:[%s220 + $0x10] sm:$0xf]
      %v234 = vld [vmem:[%s220 + $0x14] sm:$0xf]
      %v235 = vld [vmem:[%s220 + $0x18] sm:$0xf]
      %v236 = vld [vmem:[%s220 + $0x1c] sm:$0xf]
      %v237 = vld [vmem:[%s220 + $0x20] sm:$0xf]
      %v238 = vld [vmem:[%s220 + $0x24] sm:$0xf]
      %v239 = vld [vmem:[%s220 + $0x28] sm:$0xf]
      %v240 = vld [vmem:[%s220 + $0x2c] sm:$0xf]
      %v241 = vld [vmem:[%s220 + $0x30] sm:$0xf]
      %v242 = vld [vmem:[%s220 + $0x34] sm:$0xf]
      %v243 = vld [vmem:[%s220 + $0x38] sm:$0xf]
      %v244 = vld [vmem:[%s220 + $0x3c] sm:$0xf]
      %v245 = vld [vmem:[%s1] sm:$0xf]
      %v246 = vld [vmem:[%s1 + $0x4] sm:$0xf]
      %v247 = vld [vmem:[%s1 + $0x8] sm:$0xf]
      %v248 = vld [vmem:[%s1 + $0xc] sm:$0xf]
      %v249 = vld [vmem:[%s1 + $0x10] sm:$0xf]
      %v250 = vld [vmem:[%s1 + $0x14] sm:$0xf]
      %v251 = vld [vmem:[%s1 + $0x18] sm:$0xf]
      %v252 = vld [vmem:[%s1 + $0x1c] sm:$0xf]
      %v253 = vld [vmem:[%s1 + $0x20] sm:$0xf]
      %v254 = vld [vmem:[%s1 + $0x24] sm:$0xf]
      %v255 = vld [vmem:[%s1 + $0x28] sm:$0xf]
      %v256 = vld [vmem:[%s1 + $0x2c] sm:$0xf]
      %v257 = vld [vmem:[%s1 + $0x30] sm:$0xf]
      %v258 = vld [vmem:[%s1 + $0x34] sm:$0xf]
      %v259 = vld [vmem:[%s1 + $0x38] sm:$0xf]
      %v260 = vld [vmem:[%s1 + $0x3c] sm:$0xf]
      %v261 = vld [vmem:[%s2] sm:$0x1]
      %v263 = vlaneseq
      %v264 = vshrl.u32 %v263, 7
      %v265 = vsub.s32 0, %v264
      %v266 = vrot.slane %v261, %v265
      %v284 = vunpack.c.l.b16 %v229
      %v285 = vunpack.c.l.b16 %v230
      %v286 = vunpack.c.l.b16 %v231
      %v287 = vunpack.c.l.b16 %v232
      %v288 = vunpack.c.l.b16 %v233
      %v289 = vunpack.c.l.b16 %v234
      %v290 = vunpack.c.l.b16 %v235
      %v291 = vunpack.c.l.b16 %v236
      %v292 = vunpack.c.l.b16 %v237
      %v293 = vunpack.c.l.b16 %v238
      %v294 = vunpack.c.l.b16 %v239
      %v295 = vunpack.c.l.b16 %v240
      %v296 = vunpack.c.l.b16 %v241
      %v297 = vunpack.c.l.b16 %v242
      %v298 = vunpack.c.l.b16 %v243
      %v299 = vunpack.c.l.b16 %v244
      %v300 = vpack.c.b16 %v285, %v284
      %v301 = vpack.c.b16 %v287, %v286
      %v302 = vpack.c.b16 %v289, %v288
      %v303 = vpack.c.b16 %v291, %v290
      %v304 = vpack.c.b16 %v293, %v292
      %v305 = vpack.c.b16 %v295, %v294
      %v306 = vpack.c.b16 %v297, %v296
      %v307 = vpack.c.b16 %v299, %v298
      %v332 = vunpack.c.l.b16 %v245
      %v333 = vunpack.c.l.b16 %v246
      %v334 = vunpack.c.l.b16 %v247
      %v335 = vunpack.c.l.b16 %v248
      %v336 = vunpack.c.l.b16 %v249
      %v337 = vunpack.c.l.b16 %v250
      %v338 = vunpack.c.l.b16 %v251
      %v339 = vunpack.c.l.b16 %v252
      %v340 = vunpack.c.l.b16 %v253
      %v341 = vunpack.c.l.b16 %v254
      %v342 = vunpack.c.l.b16 %v255
      %v343 = vunpack.c.l.b16 %v256
      %v344 = vunpack.c.l.b16 %v257
      %v345 = vunpack.c.l.b16 %v258
      %v346 = vunpack.c.l.b16 %v259
      %v347 = vunpack.c.l.b16 %v260
      %v348 = vpack.c.b16 %v333, %v332
      %v349 = vpack.c.b16 %v335, %v334
      %v350 = vpack.c.b16 %v337, %v336
      %v351 = vpack.c.b16 %v339, %v338
      %v352 = vpack.c.b16 %v341, %v340
      %v353 = vpack.c.b16 %v343, %v342
      %v354 = vpack.c.b16 %v345, %v344
      %v355 = vpack.c.b16 %v347, %v346
      %364 = vmatprep.subr.bf16.mxu0 0
      %365 = vmatpush1.bf16.msra.mxu0 %v348
      %366 = vmatprep.subr.bf16.mxu0 0
      %367 = vmatpush1.bf16.msra.mxu0 %v349
      %368 = vmatprep.subr.bf16.mxu0 0
      %369 = vmatpush1.bf16.msra.mxu0 %v350
      %370 = vmatprep.subr.bf16.mxu0 0
      %371 = vmatpush1.bf16.msra.mxu0 %v351
      %372 = vmatprep.subr.bf16.mxu0 0
      %373 = vmatpush1.bf16.msra.mxu0 %v352
      %374 = vmatprep.subr.bf16.mxu0 0
      %375 = vmatpush1.bf16.msra.mxu0 %v353
      %376 = vmatprep.subr.bf16.mxu0 0
      %377 = vmatpush1.bf16.msra.mxu0 %v354
      %378 = vmatprep.subr.bf16.mxu0 0
      %379 = vmatpush1.bf16.msra.mxu0 %v355
      %380 = vmatprep.subr.bf16.mxu0 0
      %381 = vmatpush1.bf16.msra.mxu0 0
      %382 = vmatprep.subr.bf16.mxu0 0
      %383 = vmatpush1.bf16.msra.mxu0 0
      %384 = vmatprep.subr.bf16.mxu0 0
      %385 = vmatpush1.bf16.msra.mxu0 0
      %386 = vmatprep.subr.bf16.mxu0 0
      %387 = vmatpush1.bf16.msra.mxu0 0
      %388 = vmatprep.subr.bf16.mxu0 0
      %389 = vmatpush1.bf16.msra.mxu0 0
      %390 = vmatprep.subr.bf16.mxu0 0
      %391 = vmatpush1.bf16.msra.mxu0 0
      %392 = vmatprep.subr.bf16.mxu0 0
      %393 = vmatpush1.bf16.msra.mxu0 0
      %394 = vmatprep.subr.bf16.mxu0 0
      %395 = vmatpush1.bf16.msra.mxu0 0
      %396 = vmatprep.mubr.bf16.mxu0 0
      %397 = vmatmul.mubr.bf16.gmra.mrb[0].mxu0 %v300
      %v398 = vpop.f32.mrb[0].mxu0
      %v399 = vadd.f32 %v266, %v398
      %v400 = vpop.f32.mrb[0].mxu0
      %v401 = vpop.f32.mrb[0].mxu0
      %v402 = vadd.f32 %v266, %v401
      %v403 = vpop.f32.mrb[0].mxu0
      %404 = vmatprep.mubr.bf16.mxu0 0
      %405 = vmatmul.mubr.bf16.gmra.mrb[0].mxu0 %v301
      %v406 = vpop.f32.mrb[0].mxu0
      %v407 = vadd.f32 %v266, %v406
      %v408 = vpop.f32.mrb[0].mxu0
      %v409 = vpop.f32.mrb[0].mxu0
      %v410 = vadd.f32 %v266, %v409
      %v411 = vpop.f32.mrb[0].mxu0
      %412 = vmatprep.mubr.bf16.mxu0 0
      %413 = vmatmul.mubr.bf16.gmra.mrb[0].mxu0 %v302
      %v414 = vpop.f32.mrb[0].mxu0
      %v415 = vadd.f32 %v266, %v414
      %v416 = vpop.f32.mrb[0].mxu0
      %v417 = vpop.f32.mrb[0].mxu0
      %v418 = vadd.f32 %v266, %v417
      %v419 = vpop.f32.mrb[0].mxu0
      %420 = vmatprep.mubr.bf16.mxu0 0
      %421 = vmatmul.mubr.bf16.gmra.mrb[0].mxu0 %v303
      %v422 = vpop.f32.mrb[0].mxu0
      %v423 = vadd.f32 %v266, %v422
      %v424 = vpop.f32.mrb[0].mxu0
      %v425 = vpop.f32.mrb[0].mxu0
      %v426 = vadd.f32 %v266, %v425
      %v427 = vpop.f32.mrb[0].mxu0
      %428 = vmatprep.mubr.bf16.mxu0 0
      %429 = vmatmul.mubr.bf16.gmra.mrb[0].mxu0 %v304
      %v430 = vpop.f32.mrb[0].mxu0
      %v431 = vadd.f32 %v266, %v430
      %v432 = vpop.f32.mrb[0].mxu0
      %v433 = vpop.f32.mrb[0].mxu0
      %v434 = vadd.f32 %v266, %v433
      %v435 = vpop.f32.mrb[0].mxu0
      %436 = vmatprep.mubr.bf16.mxu0 0
      %437 = vmatmul.mubr.bf16.gmra.mrb[0].mxu0 %v305
      %v438 = vpop.f32.mrb[0].mxu0
      %v439 = vadd.f32 %v266, %v438
      %v440 = vpop.f32.mrb[0].mxu0
      %v441 = vpop.f32.mrb[0].mxu0
      %v442 = vadd.f32 %v266, %v441
      %v443 = vpop.f32.mrb[0].mxu0
      %444 = vmatprep.mubr.bf16.mxu0 0
      %445 = vmatmul.mubr.bf16.gmra.mrb[0].mxu0 %v306
      %v446 = vpop.f32.mrb[0].mxu0
      %v447 = vadd.f32 %v266, %v446
      %v448 = vpop.f32.mrb[0].mxu0
      %v449 = vpop.f32.mrb[0].mxu0
      %v450 = vadd.f32 %v266, %v449
      %v451 = vpop.f32.mrb[0].mxu0
      %452 = vmatprep.mubr.bf16.mxu0 0
      %453 = vmatmul.mubr.bf16.gmra.mrb[0].mxu0 %v307
      %v454 = vpop.f32.mrb[0].mxu0
      %v455 = vadd.f32 %v266, %v454
      %v456 = vpop.f32.mrb[0].mxu0
      %v457 = vpop.f32.mrb[0].mxu0
      %v458 = vadd.f32 %v266, %v457
      %v459 = vpop.f32.mrb[0].mxu0
      %460 = vdwg.mxu0
      %v461 = vmul.f32 %v399, 0.1
      %v462 = vmul.f32 %v402, 0.1
      %v463 = vmul.f32 %v407, 0.1
      %v464 = vmul.f32 %v410, 0.1
      %v465 = vmul.f32 %v415, 0.1
      %v466 = vmul.f32 %v418, 0.1
      %v467 = vmul.f32 %v423, 0.1
      %v468 = vmul.f32 %v426, 0.1
      %v469 = vmul.f32 %v431, 0.1
      %v470 = vmul.f32 %v434, 0.1
      %v471 = vmul.f32 %v439, 0.1
      %v472 = vmul.f32 %v442, 0.1
      %v473 = vmul.f32 %v447, 0.1
      %v474 = vmul.f32 %v450, 0.1
      %v475 = vmul.f32 %v455, 0.1
      %v476 = vmul.f32 %v458, 0.1
      %v477 = vmax.f32 %v399, %v461
      %v478 = vmax.f32 %v402, %v462
      %v479 = vmax.f32 %v407, %v463
      %v480 = vmax.f32 %v410, %v464
      %v481 = vmax.f32 %v415, %v465
      %v482 = vmax.f32 %v418, %v466
      %v483 = vmax.f32 %v423, %v467
      %v484 = vmax.f32 %v426, %v468
      %v485 = vmax.f32 %v431, %v469
      %v486 = vmax.f32 %v434, %v470
      %v487 = vmax.f32 %v439, %v471
      %v488 = vmax.f32 %v442, %v472
      %v489 = vmax.f32 %v447, %v473
      %v490 = vmax.f32 %v450, %v474
      %v491 = vmax.f32 %v455, %v475
      %v492 = vmax.f32 %v458, %v476
      %v493 = vpack.c.bf16 %v478, %v477
      %v494 = vpack.c.bf16 %v480, %v479
      %v495 = vpack.c.bf16 %v482, %v481
      %v496 = vpack.c.bf16 %v484, %v483
      %v497 = vpack.c.bf16 %v486, %v485
      %v498 = vpack.c.bf16 %v488, %v487
      %v499 = vpack.c.bf16 %v490, %v489
      %v500 = vpack.c.bf16 %v492, %v491
      %v501 = vld [vmem:[%s3] sm:$0xf]
      %v502 = vld [vmem:[%s3 + $0x4] sm:$0xf]
      %v503 = vld [vmem:[%s3 + $0x8] sm:$0xf]
      %v504 = vld [vmem:[%s3 + $0xc] sm:$0xf]
      %v505 = vld [vmem:[%s3 + $0x10] sm:$0xf]
      %v506 = vld [vmem:[%s3 + $0x14] sm:$0xf]
      %v507 = vld [vmem:[%s3 + $0x18] sm:$0xf]
      %v508 = vld [vmem:[%s3 + $0x1c] sm:$0xf]
      %v509 = vld [vmem:[%s3 + $0x20] sm:$0xf]
      %v510 = vld [vmem:[%s3 + $0x24] sm:$0xf]
      %v511 = vld [vmem:[%s3 + $0x28] sm:$0xf]
      %v512 = vld [vmem:[%s3 + $0x2c] sm:$0xf]
      %v513 = vld [vmem:[%s3 + $0x30] sm:$0xf]
      %v514 = vld [vmem:[%s3 + $0x34] sm:$0xf]
      %v515 = vld [vmem:[%s3 + $0x38] sm:$0xf]
      %v516 = vld [vmem:[%s3 + $0x3c] sm:$0xf]
      %v517 = vld [vmem:[%s4] sm:$0x1]
      %v519 = vlaneseq
      %v520 = vshrl.u32 %v519, 7
      %v521 = vsub.s32 0, %v520
      %v522 = vrot.slane %v517, %v521
      %v540 = vunpack.c.l.b16 %v501
      %v541 = vunpack.c.l.b16 %v502
      %v542 = vunpack.c.l.b16 %v503
      %v543 = vunpack.c.l.b16 %v504
      %v544 = vunpack.c.l.b16 %v505
      %v545 = vunpack.c.l.b16 %v506
      %v546 = vunpack.c.l.b16 %v507
      %v547 = vunpack.c.l.b16 %v508
      %v548 = vunpack.c.l.b16 %v509
      %v549 = vunpack.c.l.b16 %v510
      %v550 = vunpack.c.l.b16 %v511
      %v551 = vunpack.c.l.b16 %v512
      %v552 = vunpack.c.l.b16 %v513
      %v553 = vunpack.c.l.b16 %v514
      %v554 = vunpack.c.l.b16 %v515
      %v555 = vunpack.c.l.b16 %v516
      %v556 = vpack.c.b16 %v541, %v540
      %v557 = vpack.c.b16 %v543, %v542
      %v558 = vpack.c.b16 %v545, %v544
      %v559 = vpack.c.b16 %v547, %v546
      %v560 = vpack.c.b16 %v549, %v548
      %v561 = vpack.c.b16 %v551, %v550
      %v562 = vpack.c.b16 %v553, %v552
      %v563 = vpack.c.b16 %v555, %v554
      %572 = vmatprep.subr.bf16.mxu0 0
      %573 = vmatpush1.bf16.msra.mxu0 %v556
      %574 = vmatprep.subr.bf16.mxu0 0
      %575 = vmatpush1.bf16.msra.mxu0 %v557
      %576 = vmatprep.subr.bf16.mxu0 0
      %577 = vmatpush1.bf16.msra.mxu0 %v558
      %578 = vmatprep.subr.bf16.mxu0 0
      %579 = vmatpush1.bf16.msra.mxu0 %v559
      %580 = vmatprep.subr.bf16.mxu0 0
      %581 = vmatpush1.bf16.msra.mxu0 %v560
      %582 = vmatprep.subr.bf16.mxu0 0
      %583 = vmatpush1.bf16.msra.mxu0 %v561
      %584 = vmatprep.subr.bf16.mxu0 0
      %585 = vmatpush1.bf16.msra.mxu0 %v562
      %586 = vmatprep.subr.bf16.mxu0 0
      %587 = vmatpush1.bf16.msra.mxu0 %v563
      %588 = vmatprep.subr.bf16.mxu0 0
      %589 = vmatpush1.bf16.msra.mxu0 0
      %590 = vmatprep.subr.bf16.mxu0 0
      %591 = vmatpush1.bf16.msra.mxu0 0
      %592 = vmatprep.subr.bf16.mxu0 0
      %593 = vmatpush1.bf16.msra.mxu0 0
      %594 = vmatprep.subr.bf16.mxu0 0
      %595 = vmatpush1.bf16.msra.mxu0 0
      %596 = vmatprep.subr.bf16.mxu0 0
      %597 = vmatpush1.bf16.msra.mxu0 0
      %598 = vmatprep.subr.bf16.mxu0 0
      %599 = vmatpush1.bf16.msra.mxu0 0
      %600 = vmatprep.subr.bf16.mxu0 0
      %601 = vmatpush1.bf16.msra.mxu0 0
      %602 = vmatprep.subr.bf16.mxu0 0
      %603 = vmatpush1.bf16.msra.mxu0 0
      %604 = vmatprep.mubr.bf16.mxu0 0
      %605 = vmatmul.mubr.bf16.gmra.mrb[0].mxu0 %v493
      %v606 = vpop.f32.mrb[0].mxu0
      %v607 = vadd.f32 %v522, %v606
      %v608 = vpop.f32.mrb[0].mxu0
      %v609 = vpop.f32.mrb[0].mxu0
      %v610 = vadd.f32 %v522, %v609
      %v611 = vpop.f32.mrb[0].mxu0
      %612 = vmatprep.mubr.bf16.mxu0 0
      %613 = vmatmul.mubr.bf16.gmra.mrb[0].mxu0 %v494
      %v614 = vpop.f32.mrb[0].mxu0
      %v615 = vadd.f32 %v522, %v614
      %v616 = vpop.f32.mrb[0].mxu0
      %v617 = vpop.f32.mrb[0].mxu0
      %v618 = vadd.f32 %v522, %v617
      %v619 = vpop.f32.mrb[0].mxu0
      %620 = vmatprep.mubr.bf16.mxu0 0
      %621 = vmatmul.mubr.bf16.gmra.mrb[0].mxu0 %v495
      %v622 = vpop.f32.mrb[0].mxu0
      %v623 = vadd.f32 %v522, %v622
      %v624 = vpop.f32.mrb[0].mxu0
      %v625 = vpop.f32.mrb[0].mxu0
      %v626 = vadd.f32 %v522, %v625
      %v627 = vpop.f32.mrb[0].mxu0
      %628 = vmatprep.mubr.bf16.mxu0 0
      %629 = vmatmul.mubr.bf16.gmra.mrb[0].mxu0 %v496
      %v630 = vpop.f32.mrb[0].mxu0
      %v631 = vadd.f32 %v522, %v630
      %v632 = vpop.f32.mrb[0].mxu0
      %v633 = vpop.f32.mrb[0].mxu0
      %v634 = vadd.f32 %v522, %v633
      %v635 = vpop.f32.mrb[0].mxu0
      %636 = vmatprep.mubr.bf16.mxu0 0
      %637 = vmatmul.mubr.bf16.gmra.mrb[0].mxu0 %v497
      %v638 = vpop.f32.mrb[0].mxu0
      %v639 = vadd.f32 %v522, %v638
      %v640 = vpop.f32.mrb[0].mxu0
      %v641 = vpop.f32.mrb[0].mxu0
      %v642 = vadd.f32 %v522, %v641
      %v643 = vpop.f32.mrb[0].mxu0
      %644 = vmatprep.mubr.bf16.mxu0 0
      %645 = vmatmul.mubr.bf16.gmra.mrb[0].mxu0 %v498
      %v646 = vpop.f32.mrb[0].mxu0
      %v647 = vadd.f32 %v522, %v646
      %v648 = vpop.f32.mrb[0].mxu0
      %v649 = vpop.f32.mrb[0].mxu0
      %v650 = vadd.f32 %v522, %v649
      %v651 = vpop.f32.mrb[0].mxu0
      %652 = vmatprep.mubr.bf16.mxu0 0
      %653 = vmatmul.mubr.bf16.gmra.mrb[0].mxu0 %v499
      %v654 = vpop.f32.mrb[0].mxu0
      %v655 = vadd.f32 %v522, %v654
      %v656 = vpop.f32.mrb[0].mxu0
      %v657 = vpop.f32.mrb[0].mxu0
      %v658 = vadd.f32 %v522, %v657
      %v659 = vpop.f32.mrb[0].mxu0
      %660 = vmatprep.mubr.bf16.mxu0 0
      %661 = vmatmul.mubr.bf16.gmra.mrb[0].mxu0 %v500
      %v662 = vpop.f32.mrb[0].mxu0
      %v663 = vadd.f32 %v522, %v662
      %v664 = vpop.f32.mrb[0].mxu0
      %v665 = vpop.f32.mrb[0].mxu0
      %v666 = vadd.f32 %v522, %v665
      %v667 = vpop.f32.mrb[0].mxu0
      %668 = vdwg.mxu0
      %v669 = vmul.f32 %v607, 0.1
      %v670 = vmul.f32 %v610, 0.1
      %v671 = vmul.f32 %v615, 0.1
      %v672 = vmul.f32 %v618, 0.1
      %v673 = vmul.f32 %v623, 0.1
      %v674 = vmul.f32 %v626, 0.1
      %v675 = vmul.f32 %v631, 0.1
      %v676 = vmul.f32 %v634, 0.1
      %v677 = vmul.f32 %v639, 0.1
      %v678 = vmul.f32 %v642, 0.1
      %v679 = vmul.f32 %v647, 0.1
      %v680 = vmul.f32 %v650, 0.1
      %v681 = vmul.f32 %v655, 0.1
      %v682 = vmul.f32 %v658, 0.1
      %v683 = vmul.f32 %v663, 0.1
      %v684 = vmul.f32 %v666, 0.1
      %v685 = vmax.f32 %v607, %v669
      %v686 = vmax.f32 %v610, %v670
      %v687 = vmax.f32 %v615, %v671
      %v688 = vmax.f32 %v618, %v672
      %v689 = vmax.f32 %v623, %v673
      %v690 = vmax.f32 %v626, %v674
      %v691 = vmax.f32 %v631, %v675
      %v692 = vmax.f32 %v634, %v676
      %v693 = vmax.f32 %v639, %v677
      %v694 = vmax.f32 %v642, %v678
      %v695 = vmax.f32 %v647, %v679
      %v696 = vmax.f32 %v650, %v680
      %v697 = vmax.f32 %v655, %v681
      %v698 = vmax.f32 %v658, %v682
      %v699 = vmax.f32 %v663, %v683
      %v700 = vmax.f32 %v666, %v684
      %v701 = vrot.slane %v685, 4
      %v702 = vmax.f32 %v685, %v701
      %v703 = vrot.slane %v702, 2
      %v704 = vmax.f32 %v702, %v703
      %v705 = vrot.slane %v704, 1
      %v706 = vmax.f32 %v704, %v705
      %v707 = vrot.slane %v686, 4
      %v708 = vmax.f32 %v686, %v707
      %v709 = vrot.slane %v708, 2
      %v710 = vmax.f32 %v708, %v709
      %v711 = vrot.slane %v710, 1
      %v712 = vmax.f32 %v710, %v711
      %v713 = vrot.slane %v687, 4
      %v714 = vmax.f32 %v687, %v713
      %v715 = vrot.slane %v714, 2
      %v716 = vmax.f32 %v714, %v715
      %v717 = vrot.slane %v716, 1
      %v718 = vmax.f32 %v716, %v717
      %v719 = vrot.slane %v688, 4
      %v720 = vmax.f32 %v688, %v719
      %v721 = vrot.slane %v720, 2
      %v722 = vmax.f32 %v720, %v721
      %v723 = vrot.slane %v722, 1
      %v724 = vmax.f32 %v722, %v723
      %v725 = vrot.slane %v689, 4
      %v726 = vmax.f32 %v689, %v725
      %v727 = vrot.slane %v726, 2
      %v728 = vmax.f32 %v726, %v727
      %v729 = vrot.slane %v728, 1
      %v730 = vmax.f32 %v728, %v729
      %v731 = vrot.slane %v690, 4
      %v732 = vmax.f32 %v690, %v731
      %v733 = vrot.slane %v732, 2
      %v734 = vmax.f32 %v732, %v733
      %v735 = vrot.slane %v734, 1
      %v736 = vmax.f32 %v734, %v735
      %v737 = vrot.slane %v691, 4
      %v738 = vmax.f32 %v691, %v737
      %v739 = vrot.slane %v738, 2
      %v740 = vmax.f32 %v738, %v739
      %v741 = vrot.slane %v740, 1
      %v742 = vmax.f32 %v740, %v741
      %v743 = vrot.slane %v692, 4
      %v744 = vmax.f32 %v692, %v743
      %v745 = vrot.slane %v744, 2
      %v746 = vmax.f32 %v744, %v745
      %v747 = vrot.slane %v746, 1
      %v748 = vmax.f32 %v746, %v747
      %v749 = vrot.slane %v693, 4
      %v750 = vmax.f32 %v693, %v749
      %v751 = vrot.slane %v750, 2
      %v752 = vmax.f32 %v750, %v751
      %v753 = vrot.slane %v752, 1
      %v754 = vmax.f32 %v752, %v753
      %v755 = vrot.slane %v694, 4
      %v756 = vmax.f32 %v694, %v755
      %v757 = vrot.slane %v756, 2
      %v758 = vmax.f32 %v756, %v757
      %v759 = vrot.slane %v758, 1
      %v760 = vmax.f32 %v758, %v759
      %v761 = vrot.slane %v695, 4
      %v762 = vmax.f32 %v695, %v761
      %v763 = vrot.slane %v762, 2
      %v764 = vmax.f32 %v762, %v763
      %v765 = vrot.slane %v764, 1
      %v766 = vmax.f32 %v764, %v765
      %v767 = vrot.slane %v696, 4
      %v768 = vmax.f32 %v696, %v767
      %v769 = vrot.slane %v768, 2
      %v770 = vmax.f32 %v768, %v769
      %v771 = vrot.slane %v770, 1
      %v772 = vmax.f32 %v770, %v771
      %v773 = vrot.slane %v697, 4
      %v774 = vmax.f32 %v697, %v773
      %v775 = vrot.slane %v774, 2
      %v776 = vmax.f32 %v774, %v775
      %v777 = vrot.slane %v776, 1
      %v778 = vmax.f32 %v776, %v777
      %v779 = vrot.slane %v698, 4
      %v780 = vmax.f32 %v698, %v779
      %v781 = vrot.slane %v780, 2
      %v782 = vmax.f32 %v780, %v781
      %v783 = vrot.slane %v782, 1
      %v784 = vmax.f32 %v782, %v783
      %v785 = vrot.slane %v699, 4
      %v786 = vmax.f32 %v699, %v785
      %v787 = vrot.slane %v786, 2
      %v788 = vmax.f32 %v786, %v787
      %v789 = vrot.slane %v788, 1
      %v790 = vmax.f32 %v788, %v789
      %v791 = vrot.slane %v700, 4
      %v792 = vmax.f32 %v700, %v791
      %v793 = vrot.slane %v792, 2
      %v794 = vmax.f32 %v792, %v793
      %v795 = vrot.slane %v794, 1
      %v796 = vmax.f32 %v794, %v795
      %v797 = vpack.c.bf16 %v706, %v706
      %v798 = vpack.c.bf16 %v712, %v712
      %v799 = vpack.c.bf16 %v718, %v718
      %v800 = vpack.c.bf16 %v724, %v724
      %v801 = vpack.c.bf16 %v730, %v730
      %v802 = vpack.c.bf16 %v736, %v736
      %v803 = vpack.c.bf16 %v742, %v742
      %v804 = vpack.c.bf16 %v748, %v748
      %v805 = vpack.c.bf16 %v754, %v754
      %v806 = vpack.c.bf16 %v760, %v760
      %v807 = vpack.c.bf16 %v766, %v766
      %v808 = vpack.c.bf16 %v772, %v772
      %v809 = vpack.c.bf16 %v778, %v778
      %v810 = vpack.c.bf16 %v784, %v784
      %v811 = vpack.c.bf16 %v790, %v790
      %v812 = vpack.c.bf16 %v796, %v796
      %v829 = vunpack.c.l.b16 %v797
      %v830 = vunpack.c.l.b16 %v798
      %v831 = vunpack.c.l.b16 %v799
      %v832 = vunpack.c.l.b16 %v800
      %v833 = vunpack.c.l.b16 %v801
      %v834 = vunpack.c.l.b16 %v802
      %v835 = vunpack.c.l.b16 %v803
      %v836 = vunpack.c.l.b16 %v804
      %v837 = vunpack.c.l.b16 %v805
      %v838 = vunpack.c.l.b16 %v806
      %v839 = vunpack.c.l.b16 %v807
      %v840 = vunpack.c.l.b16 %v808
      %v841 = vunpack.c.l.b16 %v809
      %v842 = vunpack.c.l.b16 %v810
      %v843 = vunpack.c.l.b16 %v811
      %v844 = vunpack.c.l.b16 %v812
      %v845 = vpack.c.b16 %v829, %v829
      %v846 = vpack.c.b16 %v830, %v830
      %v847 = vpack.c.b16 %v831, %v831
      %v848 = vpack.c.b16 %v832, %v832
      %v849 = vpack.c.b16 %v833, %v833
      %v850 = vpack.c.b16 %v834, %v834
      %v851 = vpack.c.b16 %v835, %v835
      %v852 = vpack.c.b16 %v836, %v836
      %v853 = vpack.c.b16 %v837, %v837
      %v854 = vpack.c.b16 %v838, %v838
      %v855 = vpack.c.b16 %v839, %v839
      %v856 = vpack.c.b16 %v840, %v840
      %v857 = vpack.c.b16 %v841, %v841
      %v858 = vpack.c.b16 %v842, %v842
      %v859 = vpack.c.b16 %v843, %v843
      %v860 = vpack.c.b16 %v844, %v844
      %v861 = vunpack.c.l.b16 %v845
      %v862 = vunpack.c.l.b16 %v846
      %v863 = vunpack.c.l.b16 %v847
      %v864 = vunpack.c.l.b16 %v848
      %v865 = vunpack.c.l.b16 %v849
      %v866 = vunpack.c.l.b16 %v850
      %v867 = vunpack.c.l.b16 %v851
      %v868 = vunpack.c.l.b16 %v852
      %v869 = vunpack.c.l.b16 %v853
      %v870 = vunpack.c.l.b16 %v854
      %v871 = vunpack.c.l.b16 %v855
      %v872 = vunpack.c.l.b16 %v856
      %v873 = vunpack.c.l.b16 %v857
      %v874 = vunpack.c.l.b16 %v858
      %v875 = vunpack.c.l.b16 %v859
      %v876 = vunpack.c.l.b16 %v860
      %vm877 = vcmask 1041409
      %v878 = vsel %vm877, %v862, %v861
      %vm879 = vcmask 1042434
      %v880 = vsel %vm879, %v863, %v878
      %vm881 = vcmask 1043459
      %v882 = vsel %vm881, %v864, %v880
      %vm883 = vcmask 1044484
      %v884 = vsel %vm883, %v865, %v882
      %vm885 = vcmask 1045509
      %v886 = vsel %vm885, %v866, %v884
      %vm887 = vcmask 1046534
      %v888 = vsel %vm887, %v867, %v886
      %vm889 = vcmask 1047559
      %v890 = vsel %vm889, %v868, %v888
      %v891 = vsel %vm877, %v870, %v869
      %v892 = vsel %vm879, %v871, %v891
      %v893 = vsel %vm881, %v872, %v892
      %v894 = vsel %vm883, %v873, %v893
      %v895 = vsel %vm885, %v874, %v894
      %v896 = vsel %vm887, %v875, %v895
      %v897 = vsel %vm889, %v876, %v896
      %v898 = vpack.c.b16 %v890, %v890
      %v899 = vpack.c.b16 %v897, %v897
      %902 = vst [vmem:[%s226] sm:$0xf] %v898
      %903 = vst [vmem:[%s226 + $0x4] sm:$0xf] %v899
      %s904 = smul.u32 2, %s16
      %p905 = scmp.lt.s32.totalorder %s904, 3
      %s906 = scalar_select %p905, %s904, 3
      %s907 = smul.addr %s906, 4
      %s908 = scalar_lea.vmem %s5, %s907
      // Predicated region
      $region41: #{_lambda_.2} parent=39 // pred_check
        %p909 = pneg %p144
      $region42: #{_lambda_.2} parent=39 // pred_check_branch
        %911 = sbr.rel (%p909) target = $region44
      $region43: #{_lambda_.2} parent=39 // pred_region
        %s912 = smul.u32 2, %s16
      $region44: #{_lambda_.2} parent=39 // pred_fallthru
        _
    $region40: #{_lambda_.2} parent=5 // pred_fallthru
      _
    %p913 = scmp.le.s32.totalorder 2, %s11
    // Predicated region
    $region45: #{_lambda_.2} parent=5 // pred_check
      %p914 = pneg %p913
    $region46: #{_lambda_.2} parent=5 // pred_check_branch
      %916 = sbr.rel (%p914) target = $region48
    $region47: #{_lambda_.2} parent=5 // pred_region
      %s917 = ssub.s32 %s11, 2
      // Predicated region
      $region49: #{_lambda_.2} parent=47 // pred_check
        %p918 = pneg %p150
      $region50: #{_lambda_.2} parent=47 // pred_check_branch
        %920 = sbr.rel (%p918) target = $region52
      $region51: #{_lambda_.2} parent=47 // pred_region
        %s921 = smul.u32 2, %s17
        %p922 = scmp.lt.s32.totalorder %s921, 3
        %s923 = scalar_select %p922, %s921, 3
        %s924 = smul.addr %s923, 4
        %s925 = scalar_lea.vmem %s5, %s924
      $region52: #{_lambda_.2} parent=47 // pred_fallthru
        _
    $region48: #{_lambda_.2} parent=5 // pred_fallthru
      _
  $region6: #{_lambda_.2} parent=0 // loop_footer
    %s15 = sadd.s32 1, %s11
  $region7: #{_lambda_.2} parent=0 // loop_footer_branch
    %10 = sbr.rel target = $region3
  $region8: #{_lambda_.2} parent=0 // loop_exit
    _

// kernel: _lambda_.3
$region0: #{_lambda_.3}
  #allocation0 [shape = 'u32[]', space=smem, size = 0x4, offset = 0x4, fixed_abs, tag = 'smem constant byte address 0x4 - core index']
  #allocation1 [shape = 'u32[144,128]{1,0:T(1,128)}', space=vmem, size = 0x12000, scoped, tag = 'internal scratch']
  %s0 = inlined_call_operand.vmem [shape: bf16[128,128], index: 0, kind: input, shape index: {}]
  %s1 = inlined_call_operand.vmem [shape: bf16[128,128], index: 1, kind: input, shape index: {}]
  %s2 = inlined_call_operand.vmem [shape: f32[1,128], index: 2, kind: input, shape index: {}]
  %s3 = inlined_call_operand.vmem [shape: bf16[128,128], index: 3, kind: input, shape index: {}]
  %s4 = inlined_call_operand.vmem [shape: f32[1,128], index: 4, kind: input, shape index: {}]
  %s5 = inlined_call_operand.vmem [shape: f32[16,128], index: 5, kind: output, shape index: {}]
  %s6 = sld [smem:[#allocation0]]
  $region53: #{_lambda_.3} parent=0
    _
  %s8 = ssub.s32 1, %s6
  %s9 = scalar_select 0, %s8, %s6
  loop: start=0, step=1, limit=4
  $region2: #{_lambda_.3} parent=0 // loop_pre_header
    _
  $region3: #{_lambda_.3} parent=0 // loop_header
    %s11 = sphi 0, %s15
    %p12 = scmp.ge.s32.totalorder %s11, 4
    %s21 = sphi 0, %s23
    %s24 = sphi 0, %s21
    %s25 = sphi 0, %s24
    %s41 = sphi 0, %s25
    %s45 = sphi 0, %s45
    %s47 = sphi 0, %s45
    %s48 = sphi 0, %s47
    %s62 = sphi 0, %s48
    %s66 = sphi 0, %s66
    %s68 = sphi 0, %s66
    %s69 = sphi 0, %s68
    %s83 = sphi 0, %s69
    %s87 = sphi 0, %s87
    %s89 = sphi 0, %s87
    %s90 = sphi 0, %s89
    %s104 = sphi 0, %s90
    %s108 = sphi 0, %s108
    %s110 = sphi 0, %s108
    %s111 = sphi 0, %s110
    %s125 = sphi 0, %s111
    %s131 = sphi 0, %s133
    %s134 = sphi 0, %s131
    %s135 = sphi 0, %s134
    %s151 = sphi 0, %s135
  $region4: #{_lambda_.3} parent=0 // loop_header_branch
    %14 = sbr.rel (%p12) target = $region8
  $region5: #{_lambda_.3} parent=0 // loop_body
    %s16 = ssub.s32 %s11, 1
    %s17 = ssub.s32 %s11, 2
    %s18 = sadd.s32 %s11, 1
    %s19 = ssub.s32 %s11, %s18
    %p20 = scmp.eq.s32.totalorder %s19, 0
    %s22 = sadd.s32 %s21, 1
    %s23 = scalar_select %p20, %s21, %s22
    %p26 = pneg %p20
    %p27 = scmp.eq.s32.totalorder %s11, 1
    %p28 = por %p26, %p27
    %p29 = scmp.ne.s32.totalorder %s21, %s24
    %p30 = scmp.eq.s32.totalorder %s11, 0
    %p31 = por %p29, %p30
    %p32 = scmp.ne.s32.totalorder %s21, %s24
    %p33 = scmp.eq.s32.totalorder %s16, 1
    %p34 = por %p32, %p33
    %p35 = scmp.ne.s32.totalorder %s24, %s25
    %p36 = scmp.eq.s32.totalorder %s16, 0
    %p37 = por %p35, %p36
    %p38 = scmp.ne.s32.totalorder %s24, %s25
    %p39 = scmp.eq.s32.totalorder %s17, 1
    %p40 = por %p38, %p39
    %p42 = scmp.ne.s32.totalorder %s25, %s41
    %p43 = scmp.eq.s32.totalorder %s17, 0
    %p44 = por %p42, %p43
    %s46 = sadd.s32 %s45, 1
    %p49 = scmp.eq.s32.totalorder %s11, 1
    %p50 = scmp.ne.s32.totalorder %s45, %s47
    %p51 = scmp.eq.s32.totalorder %s11, 0
    %p52 = por %p50, %p51
    %p53 = scmp.ne.s32.totalorder %s45, %s47
    %p54 = scmp.eq.s32.totalorder %s16, 1
    %p55 = por %p53, %p54
    %p56 = scmp.ne.s32.totalorder %s47, %s48
    %p57 = scmp.eq.s32.totalorder %s16, 0
    %p58 = por %p56, %p57
    %p59 = scmp.ne.s32.totalorder %s47, %s48
    %p60 = scmp.eq.s32.totalorder %s17, 1
    %p61 = por %p59, %p60
    %p63 = scmp.ne.s32.totalorder %s48, %s62
    %p64 = scmp.eq.s32.totalorder %s17, 0
    %p65 = por %p63, %p64
    %s67 = sadd.s32 %s66, 1
    %p70 = scmp.eq.s32.totalorder %s11, 1
    %p71 = scmp.ne.s32.totalorder %s66, %s68
    %p72 = scmp.eq.s32.totalorder %s11, 0
    %p73 = por %p71, %p72
    %p74 = scmp.ne.s32.totalorder %s66, %s68
    %p75 = scmp.eq.s32.totalorder %s16, 1
    %p76 = por %p74, %p75
    %p77 = scmp.ne.s32.totalorder %s68, %s69
    %p78 = scmp.eq.s32.totalorder %s16, 0
    %p79 = por %p77, %p78
    %p80 = scmp.ne.s32.totalorder %s68, %s69
    %p81 = scmp.eq.s32.totalorder %s17, 1
    %p82 = por %p80, %p81
    %p84 = scmp.ne.s32.totalorder %s69, %s83
    %p85 = scmp.eq.s32.totalorder %s17, 0
    %p86 = por %p84, %p85
    %s88 = sadd.s32 %s87, 1
    %p91 = scmp.eq.s32.totalorder %s11, 1
    %p92 = scmp.ne.s32.totalorder %s87, %s89
    %p93 = scmp.eq.s32.totalorder %s11, 0
    %p94 = por %p92, %p93
    %p95 = scmp.ne.s32.totalorder %s87, %s89
    %p96 = scmp.eq.s32.totalorder %s16, 1
    %p97 = por %p95, %p96
    %p98 = scmp.ne.s32.totalorder %s89, %s90
    %p99 = scmp.eq.s32.totalorder %s16, 0
    %p100 = por %p98, %p99
    %p101 = scmp.ne.s32.totalorder %s89, %s90
    %p102 = scmp.eq.s32.totalorder %s17, 1
    %p103 = por %p101, %p102
    %p105 = scmp.ne.s32.totalorder %s90, %s104
    %p106 = scmp.eq.s32.totalorder %s17, 0
    %p107 = por %p105, %p106
    %s109 = sadd.s32 %s108, 1
    %p112 = scmp.eq.s32.totalorder %s11, 1
    %p113 = scmp.ne.s32.totalorder %s108, %s110
    %p114 = scmp.eq.s32.totalorder %s11, 0
    %p115 = por %p113, %p114
    %p116 = scmp.ne.s32.totalorder %s108, %s110
    %p117 = scmp.eq.s32.totalorder %s16, 1
    %p118 = por %p116, %p117
    %p119 = scmp.ne.s32.totalorder %s110, %s111
    %p120 = scmp.eq.s32.totalorder %s16, 0
    %p121 = por %p119, %p120
    %p122 = scmp.ne.s32.totalorder %s110, %s111
    %p123 = scmp.eq.s32.totalorder %s17, 1
    %p124 = por %p122, %p123
    %p126 = scmp.ne.s32.totalorder %s111, %s125
    %p127 = scmp.eq.s32.totalorder %s17, 0
    %p128 = por %p126, %p127
    %s129 = ssub.s32 %s11, %s18
    %p130 = scmp.eq.s32.totalorder %s129, 0
    %s132 = sadd.s32 %s131, 1
    %s133 = scalar_select %p130, %s131, %s132
    %p136 = pneg %p130
    %p137 = scmp.eq.s32.totalorder %s11, 1
    %p138 = por %p136, %p137
    %p139 = scmp.ne.s32.totalorder %s131, %s134
    %p140 = scmp.eq.s32.totalorder %s11, 0
    %p141 = por %p139, %p140
    %p142 = scmp.ne.s32.totalorder %s131, %s134
    %p143 = scmp.eq.s32.totalorder %s16, 1
    %p144 = por %p142, %p143
    %p145 = scmp.ne.s32.totalorder %s134, %s135
    %p146 = scmp.eq.s32.totalorder %s16, 0
    %p147 = por %p145, %p146
    %p148 = scmp.ne.s32.totalorder %s134, %s135
    %p149 = scmp.eq.s32.totalorder %s17, 1
    %p150 = por %p148, %p149
    %p152 = scmp.ne.s32.totalorder %s135, %s151
    %p153 = scmp.eq.s32.totalorder %s17, 0
    %p154 = por %p152, %p153
    %p155 = scmp.le.s32.totalorder 1, %s11
    %p156 = scmp.lt.s32.totalorder %s11, 3
    %p157 = pnand %p155, %p156
    %p158 = pneg %p157
    // Predicated region
    $region9: #{_lambda_.3} parent=5 // pred_check
      _
    $region10: #{_lambda_.3} parent=5 // pred_check_branch
      %160 = sbr.rel (%p157) target = $region12
    $region11: #{_lambda_.3} parent=5 // pred_region
      %s161 = ssub.s32 %s11, 1
      // Predicated region
      $region13: #{_lambda_.3} parent=11 // pred_check
        %p162 = pneg %p58
      $region14: #{_lambda_.3} parent=11 // pred_check_branch
        %164 = sbr.rel (%p162) target = $region16
      $region15: #{_lambda_.3} parent=11 // pred_region
        _
      $region16: #{_lambda_.3} parent=11 // pred_fallthru
        _
      // Predicated region
      $region17: #{_lambda_.3} parent=11 // pred_check
        %p165 = pneg %p79
      $region18: #{_lambda_.3} parent=11 // pred_check_branch
        %167 = sbr.rel (%p165) target = $region20
      $region19: #{_lambda_.3} parent=11 // pred_region
        _
      $region20: #{_lambda_.3} parent=11 // pred_fallthru
        _
      // Predicated region
      $region21: #{_lambda_.3} parent=11 // pred_check
        %p168 = pneg %p100
      $region22: #{_lambda_.3} parent=11 // pred_check_branch
        %170 = sbr.rel (%p168) target = $region24
      $region23: #{_lambda_.3} parent=11 // pred_region
        _
      $region24: #{_lambda_.3} parent=11 // pred_fallthru
        _
      // Predicated region
      $region25: #{_lambda_.3} parent=11 // pred_check
        %p171 = pneg %p121
      $region26: #{_lambda_.3} parent=11 // pred_check_branch
        %173 = sbr.rel (%p171) target = $region28
      $region27: #{_lambda_.3} parent=11 // pred_region
        _
      $region28: #{_lambda_.3} parent=11 // pred_fallthru
        _
    $region12: #{_lambda_.3} parent=5 // pred_fallthru
      _
    %p174 = scmp.lt.s32.totalorder %s11, 2
    // Predicated region
    $region29: #{_lambda_.3} parent=5 // pred_check
      %p175 = pneg %p174
    $region30: #{_lambda_.3} parent=5 // pred_check_branch
      %177 = sbr.rel (%p175) target = $region32
    $region31: #{_lambda_.3} parent=5 // pred_region
      // Predicated region
      $region33: #{_lambda_.3} parent=31 // pred_check
        %p178 = pneg %p31
      $region34: #{_lambda_.3} parent=31 // pred_check_branch
        %180 = sbr.rel (%p178) target = $region36
      $region35: #{_lambda_.3} parent=31 // pred_region
        %s181 = smul.u32 8, %s11
        %p182 = scmp.lt.s32.totalorder %s181, 15
        %s183 = scalar_select %p182, %s181, 15
        %s184 = smul.addr %s183, 4
        %s185 = scalar_lea.vmem %s0, %s184
        %s186 = smul.u32 8, %s11
      $region36: #{_lambda_.3} parent=31 // pred_fallthru
        _
    $region32: #{_lambda_.3} parent=5 // pred_fallthru
      _
    %p187 = scmp.le.s32.totalorder 1, %s11
    %p188 = scmp.lt.s32.totalorder %s11, 3
    %p189 = pnand %p187, %p188
    %p190 = pneg %p189
    // Predicated region
    $region37: #{_lambda_.3} parent=5 // pred_check
      _
    $region38: #{_lambda_.3} parent=5 // pred_check_branch
      %192 = sbr.rel (%p189) target = $region40
    $region39: #{_lambda_.3} parent=5 // pred_region
      %s193 = ssub.s32 %s11, 1
      %s194 = smul.u32 8, %s16
      %p195 = scmp.lt.s32.totalorder %s194, 15
      %s196 = scalar_select %p195, %s194, 15
      %s197 = smul.addr %s196, 4
      %s198 = scalar_lea.vmem %s0, %s197
      %p199 = pneg %p37
      %p200 = pneg %p34
      %p201 = pneg %p58
      %p202 = pneg %p55
      %p203 = pneg %p79
      %p204 = pneg %p76
      %p205 = pneg %p100
      %p206 = pneg %p97
      %p207 = pneg %p121
      %p208 = pneg %p118
      %p209 = pneg %p147
      %p210 = pneg %p144
      %p211 = scmp.lt.s32.totalorder %s16, 1
      %s212 = scalar_select %p211, %s16, 1
      %s213 = smul.addr %s212, 8
      %s214 = scalar_lea.vmem %s5, %s213
      %s215 = smul.u32 8, %s16
      %p216 = scmp.lt.s32.totalorder %s215, 15
      %s217 = scalar_select %p216, %s215, 15
      %s218 = smul.addr %s217, 4
      %s219 = scalar_lea.vmem %s0, %s218
      %s220 = smul.u32 8, %s16
      %p221 = scmp.lt.s32.totalorder %s16, 1
      %s222 = scalar_select %p221, %s16, 1
      %s223 = smul.addr %s222, 8
      %s224 = scalar_lea.vmem %s5, %s223
      %v226 = vld [vmem:[%s219] sm:$0xf]
      %v227 = vld [vmem:[%s219 + $0x4] sm:$0xf]
      %v228 = vld [vmem:[%s219 + $0x8] sm:$0xf]
      %v229 = vld [vmem:[%s219 + $0xc] sm:$0xf]
      %v230 = vld [vmem:[%s219 + $0x10] sm:$0xf]
      %v231 = vld [vmem:[%s219 + $0x14] sm:$0xf]
      %v232 = vld [vmem:[%s219 + $0x18] sm:$0xf]
      %v233 = vld [vmem:[%s219 + $0x1c] sm:$0xf]
      %v234 = vld [vmem:[%s1] sm:$0xf]
      %v235 = vld [vmem:[%s1 + $0x4] sm:$0xf]
      %v236 = vld [vmem:[%s1 + $0x8] sm:$0xf]
      %v237 = vld [vmem:[%s1 + $0xc] sm:$0xf]
      %v238 = vld [vmem:[%s1 + $0x10] sm:$0xf]
      %v239 = vld [vmem:[%s1 + $0x14] sm:$0xf]
      %v240 = vld [vmem:[%s1 + $0x18] sm:$0xf]
      %v241 = vld [vmem:[%s1 + $0x1c] sm:$0xf]
      %v242 = vld [vmem:[%s1 + $0x20] sm:$0xf]
      %v243 = vld [vmem:[%s1 + $0x24] sm:$0xf]
      %v244 = vld [vmem:[%s1 + $0x28] sm:$0xf]
      %v245 = vld [vmem:[%s1 + $0x2c] sm:$0xf]
      %v246 = vld [vmem:[%s1 + $0x30] sm:$0xf]
      %v247 = vld [vmem:[%s1 + $0x34] sm:$0xf]
      %v248 = vld [vmem:[%s1 + $0x38] sm:$0xf]
      %v249 = vld [vmem:[%s1 + $0x3c] sm:$0xf]
      %v250 = vld [vmem:[%s2] sm:$0x1]
      %v252 = vlaneseq
      %v253 = vshrl.u32 %v252, 7
      %v254 = vsub.s32 0, %v253
      %v255 = vrot.slane %v250, %v254
      %v265 = vunpack.c.l.b16 %v226
      %v266 = vunpack.c.l.b16 %v227
      %v267 = vunpack.c.l.b16 %v228
      %v268 = vunpack.c.l.b16 %v229
      %v269 = vunpack.c.l.b16 %v230
      %v270 = vunpack.c.l.b16 %v231
      %v271 = vunpack.c.l.b16 %v232
      %v272 = vunpack.c.l.b16 %v233
      %v273 = vpack.c.b16 %v266, %v265
      %v274 = vpack.c.b16 %v268, %v267
      %v275 = vpack.c.b16 %v270, %v269
      %v276 = vpack.c.b16 %v272, %v271
      %v297 = vunpack.c.l.b16 %v234
      %v298 = vunpack.c.l.b16 %v235
      %v299 = vunpack.c.l.b16 %v236
      %v300 = vunpack.c.l.b16 %v237
      %v301 = vunpack.c.l.b16 %v238
      %v302 = vunpack.c.l.b16 %v239
      %v303 = vunpack.c.l.b16 %v240
      %v304 = vunpack.c.l.b16 %v241
      %v305 = vunpack.c.l.b16 %v242
      %v306 = vunpack.c.l.b16 %v243
      %v307 = vunpack.c.l.b16 %v244
      %v308 = vunpack.c.l.b16 %v245
      %v309 = vunpack.c.l.b16 %v246
      %v310 = vunpack.c.l.b16 %v247
      %v311 = vunpack.c.l.b16 %v248
      %v312 = vunpack.c.l.b16 %v249
      %v313 = vpack.c.b16 %v298, %v297
      %v314 = vpack.c.b16 %v300, %v299
      %v315 = vpack.c.b16 %v302, %v301
      %v316 = vpack.c.b16 %v304, %v303
      %v317 = vpack.c.b16 %v306, %v305
      %v318 = vpack.c.b16 %v308, %v307
      %v319 = vpack.c.b16 %v310, %v309
      %v320 = vpack.c.b16 %v312, %v311
      %329 = vmatprep.subr.bf16.mxu0 0
      %330 = vmatpush1.bf16.msra.mxu0 %v313
      %331 = vmatprep.subr.bf16.mxu0 0
      %332 = vmatpush1.bf16.msra.mxu0 %v314
      %333 = vmatprep.subr.bf16.mxu0 0
      %334 = vmatpush1.bf16.msra.mxu0 %v315
      %335 = vmatprep.subr.bf16.mxu0 0
      %336 = vmatpush1.bf16.msra.mxu0 %v316
      %337 = vmatprep.subr.bf16.mxu0 0
      %338 = vmatpush1.bf16.msra.mxu0 %v317
      %339 = vmatprep.subr.bf16.mxu0 0
      %340 = vmatpush1.bf16.msra.mxu0 %v318
      %341 = vmatprep.subr.bf16.mxu0 0
      %342 = vmatpush1.bf16.msra.mxu0 %v319
      %343 = vmatprep.subr.bf16.mxu0 0
      %344 = vmatpush1.bf16.msra.mxu0 %v320
      %345 = vmatprep.subr.bf16.mxu0 0
      %346 = vmatpush1.bf16.msra.mxu0 0
      %347 = vmatprep.subr.bf16.mxu0 0
      %348 = vmatpush1.bf16.msra.mxu0 0
      %349 = vmatprep.subr.bf16.mxu0 0
      %350 = vmatpush1.bf16.msra.mxu0 0
      %351 = vmatprep.subr.bf16.mxu0 0
      %352 = vmatpush1.bf16.msra.mxu0 0
      %353 = vmatprep.subr.bf16.mxu0 0
      %354 = vmatpush1.bf16.msra.mxu0 0
      %355 = vmatprep.subr.bf16.mxu0 0
      %356 = vmatpush1.bf16.msra.mxu0 0
      %357 = vmatprep.subr.bf16.mxu0 0
      %358 = vmatpush1.bf16.msra.mxu0 0
      %359 = vmatprep.subr.bf16.mxu0 0
      %360 = vmatpush1.bf16.msra.mxu0 0
      %361 = vmatprep.mubr.bf16.mxu0 0
      %362 = vmatmul.mubr.bf16.gmra.mrb[0].mxu0 %v273
      %v363 = vpop.f32.mrb[0].mxu0
      %v364 = vadd.f32 %v255, %v363
      %v365 = vpop.f32.mrb[0].mxu0
      %v366 = vpop.f32.mrb[0].mxu0
      %v367 = vadd.f32 %v255, %v366
      %v368 = vpop.f32.mrb[0].mxu0
      %369 = vmatprep.mubr.bf16.mxu0 0
      %370 = vmatmul.mubr.bf16.gmra.mrb[0].mxu0 %v274
      %v371 = vpop.f32.mrb[0].mxu0
      %v372 = vadd.f32 %v255, %v371
      %v373 = vpop.f32.mrb[0].mxu0
      %v374 = vpop.f32.mrb[0].mxu0
      %v375 = vadd.f32 %v255, %v374
      %v376 = vpop.f32.mrb[0].mxu0
      %377 = vmatprep.mubr.bf16.mxu0 0
      %378 = vmatmul.mubr.bf16.gmra.mrb[0].mxu0 %v275
      %v379 = vpop.f32.mrb[0].mxu0
      %v380 = vadd.f32 %v255, %v379
      %v381 = vpop.f32.mrb[0].mxu0
      %v382 = vpop.f32.mrb[0].mxu0
      %v383 = vadd.f32 %v255, %v382
      %v384 = vpop.f32.mrb[0].mxu0
      %385 = vmatprep.mubr.bf16.mxu0 0
      %386 = vmatmul.mubr.bf16.gmra.mrb[0].mxu0 %v276
      %v387 = vpop.f32.mrb[0].mxu0
      %v388 = vadd.f32 %v255, %v387
      %v389 = vpop.f32.mrb[0].mxu0
      %v390 = vpop.f32.mrb[0].mxu0
      %v391 = vadd.f32 %v255, %v390
      %v392 = vpop.f32.mrb[0].mxu0
      %393 = vdwg.mxu0
      %v394 = vmul.f32 %v364, 0.1
      %v395 = vmul.f32 %v367, 0.1
      %v396 = vmul.f32 %v372, 0.1
      %v397 = vmul.f32 %v375, 0.1
      %v398 = vmul.f32 %v380, 0.1
      %v399 = vmul.f32 %v383, 0.1
      %v400 = vmul.f32 %v388, 0.1
      %v401 = vmul.f32 %v391, 0.1
      %v402 = vmax.f32 %v364, %v394
      %v403 = vmax.f32 %v367, %v395
      %v404 = vmax.f32 %v372, %v396
      %v405 = vmax.f32 %v375, %v397
      %v406 = vmax.f32 %v380, %v398
      %v407 = vmax.f32 %v383, %v399
      %v408 = vmax.f32 %v388, %v400
      %v409 = vmax.f32 %v391, %v401
      %v410 = vpack.c.bf16 %v403, %v402
      %v411 = vpack.c.bf16 %v405, %v404
      %v412 = vpack.c.bf16 %v407, %v406
      %v413 = vpack.c.bf16 %v409, %v408
      %v414 = vld [vmem:[%s3] sm:$0xf]
      %v415 = vld [vmem:[%s3 + $0x4] sm:$0xf]
      %v416 = vld [vmem:[%s3 + $0x8] sm:$0xf]
      %v417 = vld [vmem:[%s3 + $0xc] sm:$0xf]
      %v418 = vld [vmem:[%s3 + $0x10] sm:$0xf]
      %v419 = vld [vmem:[%s3 + $0x14] sm:$0xf]
      %v420 = vld [vmem:[%s3 + $0x18] sm:$0xf]
      %v421 = vld [vmem:[%s3 + $0x1c] sm:$0xf]
      %v422 = vld [vmem:[%s3 + $0x20] sm:$0xf]
      %v423 = vld [vmem:[%s3 + $0x24] sm:$0xf]
      %v424 = vld [vmem:[%s3 + $0x28] sm:$0xf]
      %v425 = vld [vmem:[%s3 + $0x2c] sm:$0xf]
      %v426 = vld [vmem:[%s3 + $0x30] sm:$0xf]
      %v427 = vld [vmem:[%s3 + $0x34] sm:$0xf]
      %v428 = vld [vmem:[%s3 + $0x38] sm:$0xf]
      %v429 = vld [vmem:[%s3 + $0x3c] sm:$0xf]
      %v430 = vld [vmem:[%s4] sm:$0x1]
      %v432 = vlaneseq
      %v433 = vshrl.u32 %v432, 7
      %v434 = vsub.s32 0, %v433
      %v435 = vrot.slane %v430, %v434
      %v453 = vunpack.c.l.b16 %v414
      %v454 = vunpack.c.l.b16 %v415
      %v455 = vunpack.c.l.b16 %v416
      %v456 = vunpack.c.l.b16 %v417
      %v457 = vunpack.c.l.b16 %v418
      %v458 = vunpack.c.l.b16 %v419
      %v459 = vunpack.c.l.b16 %v420
      %v460 = vunpack.c.l.b16 %v421
      %v461 = vunpack.c.l.b16 %v422
      %v462 = vunpack.c.l.b16 %v423
      %v463 = vunpack.c.l.b16 %v424
      %v464 = vunpack.c.l.b16 %v425
      %v465 = vunpack.c.l.b16 %v426
      %v466 = vunpack.c.l.b16 %v427
      %v467 = vunpack.c.l.b16 %v428
      %v468 = vunpack.c.l.b16 %v429
      %v469 = vpack.c.b16 %v454, %v453
      %v470 = vpack.c.b16 %v456, %v455
      %v471 = vpack.c.b16 %v458, %v457
      %v472 = vpack.c.b16 %v460, %v459
      %v473 = vpack.c.b16 %v462, %v461
      %v474 = vpack.c.b16 %v464, %v463
      %v475 = vpack.c.b16 %v466, %v465
      %v476 = vpack.c.b16 %v468, %v467
      %485 = vmatprep.subr.bf16.mxu0 0
      %486 = vmatpush1.bf16.msra.mxu0 %v469
      %487 = vmatprep.subr.bf16.mxu0 0
      %488 = vmatpush1.bf16.msra.mxu0 %v470
      %489 = vmatprep.subr.bf16.mxu0 0
      %490 = vmatpush1.bf16.msra.mxu0 %v471
      %491 = vmatprep.subr.bf16.mxu0 0
      %492 = vmatpush1.bf16.msra.mxu0 %v472
      %493 = vmatprep.subr.bf16.mxu0 0
      %494 = vmatpush1.bf16.msra.mxu0 %v473
      %495 = vmatprep.subr.bf16.mxu0 0
      %496 = vmatpush1.bf16.msra.mxu0 %v474
      %497 = vmatprep.subr.bf16.mxu0 0
      %498 = vmatpush1.bf16.msra.mxu0 %v475
      %499 = vmatprep.subr.bf16.mxu0 0
      %500 = vmatpush1.bf16.msra.mxu0 %v476
      %501 = vmatprep.subr.bf16.mxu0 0
      %502 = vmatpush1.bf16.msra.mxu0 0
      %503 = vmatprep.subr.bf16.mxu0 0
      %504 = vmatpush1.bf16.msra.mxu0 0
      %505 = vmatprep.subr.bf16.mxu0 0
      %506 = vmatpush1.bf16.msra.mxu0 0
      %507 = vmatprep.subr.bf16.mxu0 0
      %508 = vmatpush1.bf16.msra.mxu0 0
      %509 = vmatprep.subr.bf16.mxu0 0
      %510 = vmatpush1.bf16.msra.mxu0 0
      %511 = vmatprep.subr.bf16.mxu0 0
      %512 = vmatpush1.bf16.msra.mxu0 0
      %513 = vmatprep.subr.bf16.mxu0 0
      %514 = vmatpush1.bf16.msra.mxu0 0
      %515 = vmatprep.subr.bf16.mxu0 0
      %516 = vmatpush1.bf16.msra.mxu0 0
      %517 = vmatprep.mubr.bf16.mxu0 0
      %518 = vmatmul.mubr.bf16.gmra.mrb[0].mxu0 %v410
      %v519 = vpop.f32.mrb[0].mxu0
      %v520 = vadd.f32 %v435, %v519
      %v521 = vpop.f32.mrb[0].mxu0
      %v522 = vpop.f32.mrb[0].mxu0
      %v523 = vadd.f32 %v435, %v522
      %v524 = vpop.f32.mrb[0].mxu0
      %525 = vmatprep.mubr.bf16.mxu0 0
      %526 = vmatmul.mubr.bf16.gmra.mrb[0].mxu0 %v411
      %v527 = vpop.f32.mrb[0].mxu0
      %v528 = vadd.f32 %v435, %v527
      %v529 = vpop.f32.mrb[0].mxu0
      %v530 = vpop.f32.mrb[0].mxu0
      %v531 = vadd.f32 %v435, %v530
      %v532 = vpop.f32.mrb[0].mxu0
      %533 = vmatprep.mubr.bf16.mxu0 0
      %534 = vmatmul.mubr.bf16.gmra.mrb[0].mxu0 %v412
      %v535 = vpop.f32.mrb[0].mxu0
      %v536 = vadd.f32 %v435, %v535
      %v537 = vpop.f32.mrb[0].mxu0
      %v538 = vpop.f32.mrb[0].mxu0
      %v539 = vadd.f32 %v435, %v538
      %v540 = vpop.f32.mrb[0].mxu0
      %541 = vmatprep.mubr.bf16.mxu0 0
      %542 = vmatmul.mubr.bf16.gmra.mrb[0].mxu0 %v413
      %v543 = vpop.f32.mrb[0].mxu0
      %v544 = vadd.f32 %v435, %v543
      %v545 = vpop.f32.mrb[0].mxu0
      %v546 = vpop.f32.mrb[0].mxu0
      %v547 = vadd.f32 %v435, %v546
      %v548 = vpop.f32.mrb[0].mxu0
      %549 = vdwg.mxu0
      %v550 = vmul.f32 %v520, 0.1
      %v551 = vmul.f32 %v523, 0.1
      %v552 = vmul.f32 %v528, 0.1
      %v553 = vmul.f32 %v531, 0.1
      %v554 = vmul.f32 %v536, 0.1
      %v555 = vmul.f32 %v539, 0.1
      %v556 = vmul.f32 %v544, 0.1
      %v557 = vmul.f32 %v547, 0.1
      %v558 = vmax.f32 %v520, %v550
      %v559 = vmax.f32 %v523, %v551
      %v560 = vmax.f32 %v528, %v552
      %v561 = vmax.f32 %v531, %v553
      %v562 = vmax.f32 %v536, %v554
      %v563 = vmax.f32 %v539, %v555
      %v564 = vmax.f32 %v544, %v556
      %v565 = vmax.f32 %v547, %v557
      %v566 = vrot.slane %v558, 4
      %v567 = vmax.f32 %v558, %v566
      %v568 = vrot.slane %v567, 2
      %v569 = vmax.f32 %v567, %v568
      %v570 = vrot.slane %v569, 1
      %v571 = vmax.f32 %v569, %v570
      %v572 = vrot.slane %v559, 4
      %v573 = vmax.f32 %v559, %v572
      %v574 = vrot.slane %v573, 2
      %v575 = vmax.f32 %v573, %v574
      %v576 = vrot.slane %v575, 1
      %v577 = vmax.f32 %v575, %v576
      %v578 = vrot.slane %v560, 4
      %v579 = vmax.f32 %v560, %v578
      %v580 = vrot.slane %v579, 2
      %v581 = vmax.f32 %v579, %v580
      %v582 = vrot.slane %v581, 1
      %v583 = vmax.f32 %v581, %v582
      %v584 = vrot.slane %v561, 4
      %v585 = vmax.f32 %v561, %v584
      %v586 = vrot.slane %v585, 2
      %v587 = vmax.f32 %v585, %v586
      %v588 = vrot.slane %v587, 1
      %v589 = vmax.f32 %v587, %v588
      %v590 = vrot.slane %v562, 4
      %v591 = vmax.f32 %v562, %v590
      %v592 = vrot.slane %v591, 2
      %v593 = vmax.f32 %v591, %v592
      %v594 = vrot.slane %v593, 1
      %v595 = vmax.f32 %v593, %v594
      %v596 = vrot.slane %v563, 4
      %v597 = vmax.f32 %v563, %v596
      %v598 = vrot.slane %v597, 2
      %v599 = vmax.f32 %v597, %v598
      %v600 = vrot.slane %v599, 1
      %v601 = vmax.f32 %v599, %v600
      %v602 = vrot.slane %v564, 4
      %v603 = vmax.f32 %v564, %v602
      %v604 = vrot.slane %v603, 2
      %v605 = vmax.f32 %v603, %v604
      %v606 = vrot.slane %v605, 1
      %v607 = vmax.f32 %v605, %v606
      %v608 = vrot.slane %v565, 4
      %v609 = vmax.f32 %v565, %v608
      %v610 = vrot.slane %v609, 2
      %v611 = vmax.f32 %v609, %v610
      %v612 = vrot.slane %v611, 1
      %v613 = vmax.f32 %v611, %v612
      %vm622 = vcmask 1041409
      %v623 = vsel %vm622, %v577, %v571
      %vm624 = vcmask 1042434
      %v625 = vsel %vm624, %v583, %v623
      %vm626 = vcmask 1043459
      %v627 = vsel %vm626, %v589, %v625
      %vm628 = vcmask 1044484
      %v629 = vsel %vm628, %v595, %v627
      %vm630 = vcmask 1045509
      %v631 = vsel %vm630, %v601, %v629
      %vm632 = vcmask 1046534
      %v633 = vsel %vm632, %v607, %v631
      %vm634 = vcmask 1047559
      %v635 = vsel %vm634, %v613, %v633
      %637 = vst [vmem:[%s224] sm:$0xff] %v635
      %p638 = scmp.lt.s32.totalorder %s16, 1
      %s639 = scalar_select %p638, %s16, 1
      %s640 = smul.addr %s639, 8
      %s641 = scalar_lea.vmem %s5, %s640
      // Predicated region
      $region41: #{_lambda_.3} parent=39 // pred_check
        %p642 = pneg %p144
      $region42: #{_lambda_.3} parent=39 // pred_check_branch
        %644 = sbr.rel (%p642) target = $region44
      $region43: #{_lambda_.3} parent=39 // pred_region
        _
      $region44: #{_lambda_.3} parent=39 // pred_fallthru
        _
    $region40: #{_lambda_.3} parent=5 // pred_fallthru
      _
    %p645 = scmp.le.s32.totalorder 2, %s11
    // Predicated region
    $region45: #{_lambda_.3} parent=5 // pred_check
      %p646 = pneg %p645
    $region46: #{_lambda_.3} parent=5 // pred_check_branch
      %648 = sbr.rel (%p646) target = $region48
    $region47: #{_lambda_.3} parent=5 // pred_region
      %s649 = ssub.s32 %s11, 2
      // Predicated region
      $region49: #{_lambda_.3} parent=47 // pred_check
        %p650 = pneg %p150
      $region50: #{_lambda_.3} parent=47 // pred_check_branch
        %652 = sbr.rel (%p650) target = $region52
      $region51: #{_lambda_.3} parent=47 // pred_region
        %p653 = scmp.lt.s32.totalorder %s17, 1
        %s654 = scalar_select %p653, %s17, 1
        %s655 = smul.addr %s654, 8
        %s656 = scalar_lea.vmem %s5, %s655
      $region52: #{_lambda_.3} parent=47 // pred_fallthru
        _
    $region48: #{_lambda_.3} parent=5 // pred_fallthru
      _
  $region6: #{_lambda_.3} parent=0 // loop_footer
    %s15 = sadd.s32 1, %s11
  $region7: #{_lambda_.3} parent=0 // loop_footer_branch
    %10 = sbr.rel target = $region3
  $region8: #{_lambda_.3} parent=0 // loop_exit
    _

</llo_original>
